<compile_context>
chip_gen: v6e
topology: v6e:2x2x1
jax: 0.10.0
libtpu: 0.0.40
codegen_flags: <defaults>
</compile_context>

<pallas_src>
import jax
import jax.numpy as jnp
from jax.experimental import pallas as pl
from jax.experimental.pallas import tpu as pltpu

_NEG = -1e30  # bias fill for padded class columns -> exp() underflows to 0 in log_softmax


def _round_up(a, b):
    return (a + b - 1) // b * b


def _pick_tiles(n):
    """Padded node count + (row-tile, contraction-tile) sizes that divide it.

    tm is capped at 512 and, when possible, chosen so the row axis has >=2 tiles
    (megacore sharding on v7x).  tk is grown as far as 2048 (streamed A strip only
    costs 2*tm*tk*2 B of double-buffered VMEM, which the DMA pipeline hides).
    """
    np_ = _round_up(max(n, 1), 128)
    tm = 128
    for cand in (512, 256):
        if np_ % cand == 0 and np_ // cand >= 2:
            tm = cand
            break
    tk = 128
    for cand in (2048, 1024, 512, 256):
        if np_ % cand == 0:
            tk = cand
            break
    return np_, tm, tk


def _vmem_estimate_bytes(np_, tm, tk, hp, mp, cp):
    """Conservative VMEM accounting for kernel 2 (double-buffered where applicable)."""
    a_buf = 2 * tm * tk * 2          # streamed A strip (bf16, double-buffered)
    xw_buf = 2 * np_ * hp * 2        # resident XW slab (bf16)
    w_buf = 2 * (hp * mp + mp * cp) * 2
    bias_buf = 2 * (hp + mp + cp) * 4
    dinv_buf = 2 * tm * 128 * 4      # (tm, 1) lane-padded
    acc = tm * hp * 4                # f32 scratch accumulator
    out_buf = 2 * tm * cp * 4        # f32 output block
    return a_buf + xw_buf + w_buf + bias_buf + dinv_buf + acc + out_buf


# --------------- kernel 1: XW = (X @ W_gcn) * dinv[:, None] (computed once) ---------------
def _xw_kernel(x_ref, wg_ref, dinv_ref, o_ref):
    xw = jnp.dot(x_ref[...], wg_ref[...], preferred_element_type=jnp.float32)
    # fold the right-hand D^{-1/2} into XW rows (f32, then cast once to bf16)
    o_ref[...] = (xw * dinv_ref[...]).astype(o_ref.dtype)


# ---------- kernel 2: tiled (A+I) @ XW with resident XW + fused MLP + log_softmax ----------
def _agg_mlp_kernel(a_ref, xw_ref, dinv_ref, bg_ref, w1_ref, b1_ref, w2_ref, b2_ref,
                    o_ref, acc_ref):
    k = pl.program_id(1)
    tk = a_ref.shape[1]  # static contraction tile size

    @pl.when(k == 0)
    def _():
        acc_ref[...] = jnp.zeros_like(acc_ref)

    # XW is VMEM-resident (constant-index BlockSpec); slice the contraction strip here.
    koff = pl.multiple_of(k * tk, tk)
    acc_ref[...] += jnp.dot(a_ref[...], xw_ref[pl.ds(koff, tk), :],
                            preferred_element_type=jnp.float32)

    @pl.when(k == pl.num_programs(1) - 1)
    def _():
        # left D^{-1/2} (per output row) + GCNConv bias + ReLU (f32 epilogue)
        h = jnp.maximum(acc_ref[...] * dinv_ref[...] + bg_ref[...], 0.0)
        # mlp: Linear + ReLU
        h1 = jnp.dot(h.astype(w1_ref.dtype), w1_ref[...],
                     preferred_element_type=jnp.float32) + b1_ref[...]
        h1 = jnp.maximum(h1, 0.0)
        # classifier: Linear (padded class columns carry a -1e30 bias)
        logits = jnp.dot(h1.astype(w2_ref.dtype), w2_ref[...],
                         preferred_element_type=jnp.float32) + b2_ref[...]
        # log_softmax over the class axis; padded columns contribute exp(-huge) = 0.
        m = jnp.max(logits, axis=1, keepdims=True)
        shifted = logits - m
        lse = jnp.log(jnp.sum(jnp.exp(shifted), axis=1, keepdims=True))
        o_ref[...] = shifted - lse


def gnn_mlp_forward(x, edge_index, params):
    """x: [N, input_dim] f32, edge_index: [2, E] int32 (row 0 = source, row 1 = target)."""
    wg, bg, w1, b1, w2, b2 = params
    n, f_in = x.shape
    h_dim = wg.shape[1]
    m_dim = w1.shape[1]
    c_dim = w2.shape[1]

    # ---- lane-/tile-friendly padding (everything multiple of 128) ----
    np_, tm, tk = _pick_tiles(n)
    fp = _round_up(f_in, 128)
    hp = _round_up(h_dim, 128)
    mp = _round_up(m_dim, 128)
    cp = _round_up(c_dim, 128)

    # ---- plain-JAX glue (PyG GCNConv semantics) ----
    # NOTE: assumes edge_index has no pre-existing self-loops (PyG add_self_loops).
    # (A + I) is scattered directly as exact 0/1 bf16 into the padded buffer; the
    # degree normalization is kept out of the matrix and applied inside the kernels.
    idx = jnp.arange(n, dtype=jnp.int32)
    a_p = (jnp.zeros((np_, np_), jnp.bfloat16)
           .at[edge_index[1], edge_index[0]].add(jnp.bfloat16(1.0))
           .at[idx, idx].add(jnp.bfloat16(1.0)))
    deg = jnp.zeros((n,), jnp.float32).at[edge_index[1]].add(1.0) + 1.0
    dinv = jnp.where(deg > 0, 1.0 / jnp.sqrt(deg), 0.0)
    dinv_p = jnp.zeros((np_, 1), jnp.float32).at[:n, 0].set(dinv)

    x_p = jnp.zeros((np_, fp), jnp.bfloat16).at[:n, :f_in].set(x.astype(jnp.bfloat16))
    wg_p = jnp.zeros((fp, hp), jnp.bfloat16).at[:f_in, :h_dim].set(wg.astype(jnp.bfloat16))
    w1_p = jnp.zeros((hp, mp), jnp.bfloat16).at[:h_dim, :m_dim].set(w1.astype(jnp.bfloat16))
    w2_p = jnp.zeros((mp, cp), jnp.bfloat16).at[:m_dim, :c_dim].set(w2.astype(jnp.bfloat16))
    bg_p = jnp.zeros((1, hp), jnp.float32).at[0, :h_dim].set(bg)
    b1_p = jnp.zeros((1, mp), jnp.float32).at[0, :m_dim].set(b1)
    b2_p = jnp.full((1, cp), _NEG, jnp.float32).at[0, :c_dim].set(b2)

    # ---- Pallas call 1: XW = (X @ W_gcn) * dinv (hoisted, computed once) ----
    xw = pl.pallas_call(
        _xw_kernel,
        out_shape=jax.ShapeDtypeStruct((np_, hp), jnp.bfloat16),
        grid=(np_ // tm,),
        in_specs=[pl.BlockSpec((tm, fp), lambda i: (i, 0)),
                  pl.BlockSpec((fp, hp), lambda i: (0, 0)),
                  pl.BlockSpec((tm, 1), lambda i: (i, 0))],
        out_specs=pl.BlockSpec((tm, hp), lambda i: (i, 0)),
        compiler_params=pltpu.CompilerParams(
            dimension_semantics=("parallel",)),
    )(x_p, wg_p, dinv_p)

    # ---- Pallas call 2: tiled aggregation (resident XW) + fused MLP + log_softmax ----
    flops = 2 * np_ * np_ * hp + 2 * np_ * hp * mp + 2 * np_ * mp * cp
    bytes_acc = (np_ * np_ + np_ * hp + hp * mp + mp * cp) * 2 + np_ * (cp + 1) * 4

    # Re-derived VMEM budget: fits the chosen tiles, capped at 56 MiB so it is safe on
    # v7x's 64 MiB VMEM (v5e/v6e have 128 MiB and could go higher).
    vmem_limit = min(max(int(1.5 * _vmem_estimate_bytes(np_, tm, tk, hp, mp, cp))
                         + (8 << 20), 32 << 20), 56 << 20)

    out = pl.pallas_call(
        _agg_mlp_kernel,
        out_shape=jax.ShapeDtypeStruct((np_, cp), jnp.float32),
        grid_spec=pltpu.PrefetchScalarGridSpec(
            num_scalar_prefetch=0,
            grid=(np_ // tm, np_ // tk),
            in_specs=[
                pl.BlockSpec((tm, tk), lambda i, k: (i, k)),    # (A+I) row strip (streamed)
                pl.BlockSpec((np_, hp), lambda i, k: (0, 0)),   # XW: VMEM-resident, read once
                pl.BlockSpec((tm, 1), lambda i, k: (i, 0)),     # per-row dinv (left D^{-1/2})
                pl.BlockSpec((1, hp), lambda i, k: (0, 0)),     # gcn bias
                pl.BlockSpec((hp, mp), lambda i, k: (0, 0)),    # mlp weight
                pl.BlockSpec((1, mp), lambda i, k: (0, 0)),     # mlp bias
                pl.BlockSpec((mp, cp), lambda i, k: (0, 0)),    # classifier weight
                pl.BlockSpec((1, cp), lambda i, k: (0, 0)),     # classifier bias (+ -1e30 pad)
            ],
            out_specs=pl.BlockSpec((tm, cp), lambda i, k: (i, 0)),
            scratch_shapes=[pltpu.VMEM((tm, hp), jnp.float32)],
        ),
        compiler_params=pltpu.CompilerParams(
            dimension_semantics=("parallel", "arbitrary"),
            vmem_limit_bytes=vmem_limit,
        ),
        cost_estimate=pl.CostEstimate(
            flops=flops, transcendentals=np_ * cp, bytes_accessed=bytes_acc),
    )(a_p, xw, dinv_p, bg_p, w1_p, b1_p, w2_p, b2_p)

    return out[:n, :c_dim]


def init_params(key, input_dim, hidden_dim, output_dim, mlp_hidden_dim):
    ks = jax.random.split(key, 6)

    def glorot(k, shape):
        lim = jnp.sqrt(6.0 / (shape[0] + shape[1]))
        return jax.random.uniform(k, shape, jnp.float32, -lim, lim)

    wg = glorot(ks[0], (input_dim, hidden_dim))
    bg = jnp.zeros((hidden_dim,), jnp.float32)
    w1 = glorot(ks[1], (hidden_dim, mlp_hidden_dim))
    b1 = 0.01 * jax.random.normal(ks[2], (mlp_hidden_dim,), jnp.float32)
    w2 = glorot(ks[3], (mlp_hidden_dim, output_dim))
    b2 = 0.01 * jax.random.normal(ks[4], (output_dim,), jnp.float32)
    return (wg, bg, w1, b1, w2, b2)


def reference_forward(x, edge_index, params):
    # pure-f32 JAX reference (mirrors the PyTorch module)
    wg, bg, w1, b1, w2, b2 = params
    n = x.shape[0]
    adj = jnp.zeros((n, n), jnp.float32).at[edge_index[1], edge_index[0]].add(1.0)
    adj = adj + jnp.eye(n, dtype=jnp.float32)
    deg = jnp.sum(adj, axis=1)
    dinv = jnp.where(deg > 0, 1.0 / jnp.sqrt(deg), 0.0)
    a_hat = dinv[:, None] * adj * dinv[None, :]
    h = jnp.maximum(a_hat @ (x @ wg) + bg, 0.0)
    h1 = jnp.maximum(h @ w1 + b1, 0.0)
    logits = h1 @ w2 + b2
    return jax.nn.log_softmax(logits, axis=1)


if __name__ == "__main__":
    key = jax.random.PRNGKey(0)
    k_x, k_p = jax.random.split(key)

    # small shapes: N=16 nodes, input_dim=8, hidden=32, mlp_hidden=32, output=4
    N, input_dim, hidden_dim, mlp_hidden_dim, output_dim = 16, 8, 32, 32, 4

    x = jax.random.normal(k_x, (N, input_dim), jnp.float32)
    # ring graph (bidirectional edges)
    src = jnp.arange(N, dtype=jnp.int32)
    dst = (src + 1) % N
    edge_index = jnp.stack([jnp.concatenate([src, dst]),
                            jnp.concatenate([dst, src])], axis=0)

    params = init_params(k_p, input_dim, hidden_dim, output_dim, mlp_hidden_dim)

    out = jax.jit(gnn_mlp_forward)(x, edge_index, params)
    out = jax.block_until_ready(out)

    ref = reference_forward(x, edge_index, params)
    assert out.shape == (N, output_dim)
    # bf16 MXU operands (f32 accumulation, exact 0/1 A) vs. the pure-f32 reference
    assert jnp.allclose(out, ref, atol=5e-2, rtol=5e-2), float(jnp.max(jnp.abs(out - ref)))
    assert bool(jnp.all(jnp.isfinite(out)))

    print("KERNEL_OK")
</pallas_src>

<mosaic_0001>
module attributes {stable_mosaic.version = 11 : i64} {
  func.func private @main(%arg0: i32) attributes {dimension_semantics = [#tpu.dimension_semantics<core_parallel>], iteration_bounds = array<i64: 2>, tpu.core_type = #tpu.core_type<sc_scalar_subcore>, window_params = []} {
    return
  }
}

module attributes {stable_mosaic.version = 11 : i64} {
  func.func private @main(%arg0: i32) attributes {dimension_semantics = [#tpu.dimension_semantics<core_parallel>], iteration_bounds = array<i64: 2>, tpu.core_type = #tpu.core_type<sc_scalar_subcore>, window_params = []} {
    return
  }
}

module attributes {stable_mosaic.version = 11 : i64} {
  func.func @_xw_kernel(%arg0: i32, %arg1: memref<128x128xbf16, #tpu.memory_space<vmem>>, %arg2: memref<128x128xbf16, #tpu.memory_space<vmem>>, %arg3: memref<128x1xf32, #tpu.memory_space<vmem>>, %arg4: memref<128x128xbf16, #tpu.memory_space<vmem>>) attributes {dimension_semantics = [#tpu.dimension_semantics<parallel>], iteration_bounds = array<i64: 1>, scalar_prefetch = 0 : i64, scratch_operands = 0 : i64, tpu.core_type = #tpu.core_type<tc>, window_params = [{transform_indices = @transform_0, window_bounds = array<i64: 128, 128>}, {pipeline_mode = #tpu.pipeline_mode<synchronous>, transform_indices = @transform_1, window_bounds = array<i64: 128, 128>}, {transform_indices = @transform_2, window_bounds = array<i64: 128, 1>}, {transform_indices = @transform_3, window_bounds = array<i64: 128, 128>}]} {
    %c0 = arith.constant 0 : index
    %c0_0 = arith.constant 0 : index
    %0 = vector.load %arg1[%c0, %c0_0] : memref<128x128xbf16, #tpu.memory_space<vmem>>, vector<128x128xbf16>
    %c0_1 = arith.constant 0 : index
    %c0_2 = arith.constant 0 : index
    %1 = vector.load %arg2[%c0_1, %c0_2] : memref<128x128xbf16, #tpu.memory_space<vmem>>, vector<128x128xbf16>
    %cst = arith.constant dense<0.000000e+00> : vector<128x128xf32>
    %2 = tpu.matmul %0, %1, %cst {dimension_numbers = #tpu.dot_dimension_numbers<[1], [0], [0], [1], [0, 0, 1, 1], [], []>} : vector<128x128xbf16>, vector<128x128xbf16>, vector<128x128xf32> -> vector<128x128xf32>
    %c0_3 = arith.constant 0 : index
    %c0_4 = arith.constant 0 : index
    %3 = vector.load %arg3[%c0_3, %c0_4] : memref<128x1xf32, #tpu.memory_space<vmem>>, vector<128x1xf32>
    %4 = vector.broadcast %3 : vector<128x1xf32> to vector<128x128xf32>
    %5 = arith.mulf %2, %4 : vector<128x128xf32>
    %6 = arith.truncf %5 : vector<128x128xf32> to vector<128x128xbf16>
    %c0_5 = arith.constant 0 : index
    %c0_6 = arith.constant 0 : index
    %7 = vector.load %arg4[%c0_5, %c0_6] : memref<128x128xbf16, #tpu.memory_space<vmem>>, vector<128x128xbf16>
    tpu.vector_store %arg4[%c0_5, %c0_6], %6 {strides = array<i32>} : memref<128x128xbf16, #tpu.memory_space<vmem>>, vector<128x128xbf16>,
    return
  }
  func.func @transform_0(%arg0: i32) -> (i32, i32) {
    %c0_i32 = arith.constant 0 : i32
    %c0_i32_0 = arith.constant 0 : i32
    return %arg0, %c0_i32 : i32, i32
  }
  func.func @transform_1(%arg0: i32) -> (i32, i32) {
    %c0_i32 = arith.constant 0 : i32
    %c0_i32_0 = arith.constant 0 : i32
    %c0_i32_1 = arith.constant 0 : i32
    return %c0_i32, %c0_i32_0 : i32, i32
  }
  func.func @transform_2(%arg0: i32) -> (i32, i32) {
    %c0_i32 = arith.constant 0 : i32
    %c0_i32_0 = arith.constant 0 : i32
    return %arg0, %c0_i32 : i32, i32
  }
  func.func @transform_3(%arg0: i32) -> (i32, i32) {
    %c0_i32 = arith.constant 0 : i32
    %c0_i32_0 = arith.constant 0 : i32
    return %arg0, %c0_i32 : i32, i32
  }
}

module attributes {stable_mosaic.version = 11 : i64} {
  func.func @_agg_mlp_kernel(%arg0: i32, %arg1: i32, %arg2: memref<128x128xbf16, #tpu.memory_space<vmem>>, %arg3: memref<128x128xbf16, #tpu.memory_space<vmem>>, %arg4: memref<128x1xf32, #tpu.memory_space<vmem>>, %arg5: memref<1x128xf32, #tpu.memory_space<vmem>>, %arg6: memref<128x128xbf16, #tpu.memory_space<vmem>>, %arg7: memref<1x128xf32, #tpu.memory_space<vmem>>, %arg8: memref<128x128xbf16, #tpu.memory_space<vmem>>, %arg9: memref<1x128xf32, #tpu.memory_space<vmem>>, %arg10: memref<128x128xf32, #tpu.memory_space<vmem>>, %arg11: memref<128x128xf32, #tpu.memory_space<vmem>>) attributes {dimension_semantics = [#tpu.dimension_semantics<parallel>, #tpu.dimension_semantics<arbitrary>], iteration_bounds = array<i64: 1, 1>, scalar_prefetch = 0 : i64, scratch_operands = 1 : i64, tpu.core_type = #tpu.core_type<tc>, window_params = [{transform_indices = @transform_0, window_bounds = array<i64: 128, 128>}, {pipeline_mode = #tpu.pipeline_mode<synchronous>, transform_indices = @transform_1, window_bounds = array<i64: 128, 128>}, {transform_indices = @transform_2, window_bounds = array<i64: 128, 1>}, {pipeline_mode = #tpu.pipeline_mode<synchronous>, transform_indices = @transform_3, window_bounds = array<i64: 1, 128>}, {pipeline_mode = #tpu.pipeline_mode<synchronous>, transform_indices = @transform_4, window_bounds = array<i64: 128, 128>}, {pipeline_mode = #tpu.pipeline_mode<synchronous>, transform_indices = @transform_5, window_bounds = array<i64: 1, 128>}, {pipeline_mode = #tpu.pipeline_mode<synchronous>, transform_indices = @transform_6, window_bounds = array<i64: 128, 128>}, {pipeline_mode = #tpu.pipeline_mode<synchronous>, transform_indices = @transform_7, window_bounds = array<i64: 1, 128>}, {transform_indices = @transform_8, window_bounds = array<i64: 128, 128>}]} {
    %c0_i32 = arith.constant 0 : i32
    %0 = arith.cmpi eq, %arg1, %c0_i32 : i32
    %1 = arith.extui %0 : i1 to i32
    %c0_i32_0 = arith.constant 0 : i32
    %2 = arith.cmpi ne, %1, %c0_i32_0 : i32
    scf.if %2 {
      %cst_9 = arith.constant 0.000000e+00 : f32
      %15 = vector.broadcast %cst_9 : f32 to vector<128x128xf32>
      %c0_10 = arith.constant 0 : index
      %c0_11 = arith.constant 0 : index
      %16 = vector.load %arg11[%c0_10, %c0_11] : memref<128x128xf32, #tpu.memory_space<vmem>>, vector<128x128xf32>
      tpu.vector_store %arg11[%c0_10, %c0_11], %15 {strides = array<i32>} : memref<128x128xf32, #tpu.memory_space<vmem>>, vector<128x128xf32>,
    } else {
    }
    %c128_i32 = arith.constant 128 : i32
    %3 = arith.muli %arg1, %c128_i32 : i32
    %4 = tpu.assume_multiple %3, 128 : i32
    %c0 = arith.constant 0 : index
    %c0_1 = arith.constant 0 : index
    %5 = vector.load %arg11[%c0, %c0_1] : memref<128x128xf32, #tpu.memory_space<vmem>>, vector<128x128xf32>
    %c0_2 = arith.constant 0 : index
    %c0_3 = arith.constant 0 : index
    %6 = vector.load %arg2[%c0_2, %c0_3] : memref<128x128xbf16, #tpu.memory_space<vmem>>, vector<128x128xbf16>
    %7 = arith.index_cast %4 : i32 to index
    %c0_4 = arith.constant 0 : index
    %8 = vector.load %arg3[%7, %c0_4] : memref<128x128xbf16, #tpu.memory_space<vmem>>, vector<128x128xbf16>
    %cst = arith.constant dense<0.000000e+00> : vector<128x128xf32>
    %9 = tpu.matmul %6, %8, %cst {dimension_numbers = #tpu.dot_dimension_numbers<[1], [0], [0], [1], [0, 0, 1, 1], [], []>} : vector<128x128xbf16>, vector<128x128xbf16>, vector<128x128xf32> -> vector<128x128xf32>
    %10 = arith.addf %5, %9 : vector<128x128xf32>
    %c0_5 = arith.constant 0 : index
    %c0_6 = arith.constant 0 : index
    %11 = vector.load %arg11[%c0_5, %c0_6] : memref<128x128xf32, #tpu.memory_space<vmem>>, vector<128x128xf32>
    tpu.vector_store %arg11[%c0_5, %c0_6], %10 {strides = array<i32>} : memref<128x128xf32, #tpu.memory_space<vmem>>, vector<128x128xf32>,
    %c0_i32_7 = arith.constant 0 : i32
    %12 = arith.cmpi eq, %arg1, %c0_i32_7 : i32
    %13 = arith.extui %12 : i1 to i32
    %c0_i32_8 = arith.constant 0 : i32
    %14 = arith.cmpi ne, %13, %c0_i32_8 : i32
    scf.if %14 {
      %c0_9 = arith.constant 0 : index
      %c0_10 = arith.constant 0 : index
      %15 = vector.load %arg11[%c0_9, %c0_10] : memref<128x128xf32, #tpu.memory_space<vmem>>, vector<128x128xf32>
      %c0_11 = arith.constant 0 : index
      %c0_12 = arith.constant 0 : index
      %16 = vector.load %arg4[%c0_11, %c0_12] : memref<128x1xf32, #tpu.memory_space<vmem>>, vector<128x1xf32>
      %17 = vector.broadcast %16 : vector<128x1xf32> to vector<128x128xf32>
      %18 = arith.mulf %15, %17 : vector<128x128xf32>
      %c0_13 = arith.constant 0 : index
      %c0_14 = arith.constant 0 : index
      %19 = vector.load %arg5[%c0_13, %c0_14] : memref<1x128xf32, #tpu.memory_space<vmem>>, vector<1x128xf32>
      %20 = vector.broadcast %19 : vector<1x128xf32> to vector<128x128xf32>
      %21 = arith.addf %18, %20 : vector<128x128xf32>
      %cst_15 = arith.constant 0.000000e+00 : f32
      %22 = vector.broadcast %cst_15 : f32 to vector<128x128xf32>
      %23 = arith.maximumf %21, %22 : vector<128x128xf32>
      %24 = arith.truncf %23 : vector<128x128xf32> to vector<128x128xbf16>
      %c0_16 = arith.constant 0 : index
      %c0_17 = arith.constant 0 : index
      %25 = vector.load %arg6[%c0_16, %c0_17] : memref<128x128xbf16, #tpu.memory_space<vmem>>, vector<128x128xbf16>
      %cst_18 = arith.constant dense<0.000000e+00> : vector<128x128xf32>
      %26 = tpu.matmul %24, %25, %cst_18 {dimension_numbers = #tpu.dot_dimension_numbers<[1], [0], [0], [1], [0, 0, 1, 1], [], []>} : vector<128x128xbf16>, vector<128x128xbf16>, vector<128x128xf32> -> vector<128x128xf32>
      %c0_19 = arith.constant 0 : index
      %c0_20 = arith.constant 0 : index
      %27 = vector.load %arg7[%c0_19, %c0_20] : memref<1x128xf32, #tpu.memory_space<vmem>>, vector<1x128xf32>
      %28 = vector.broadcast %27 : vector<1x128xf32> to vector<128x128xf32>
      %29 = arith.addf %26, %28 : vector<128x128xf32>
      %cst_21 = arith.constant 0.000000e+00 : f32
      %30 = vector.broadcast %cst_21 : f32 to vector<128x128xf32>
      %31 = arith.maximumf %29, %30 : vector<128x128xf32>
      %32 = arith.truncf %31 : vector<128x128xf32> to vector<128x128xbf16>
      %c0_22 = arith.constant 0 : index
      %c0_23 = arith.constant 0 : index
      %33 = vector.load %arg8[%c0_22, %c0_23] : memref<128x128xbf16, #tpu.memory_space<vmem>>, vector<128x128xbf16>
      %cst_24 = arith.constant dense<0.000000e+00> : vector<128x128xf32>
      %34 = tpu.matmul %32, %33, %cst_24 {dimension_numbers = #tpu.dot_dimension_numbers<[1], [0], [0], [1], [0, 0, 1, 1], [], []>} : vector<128x128xbf16>, vector<128x128xbf16>, vector<128x128xf32> -> vector<128x128xf32>
      %c0_25 = arith.constant 0 : index
      %c0_26 = arith.constant 0 : index
      %35 = vector.load %arg9[%c0_25, %c0_26] : memref<1x128xf32, #tpu.memory_space<vmem>>, vector<1x128xf32>
      %36 = vector.broadcast %35 : vector<1x128xf32> to vector<128x128xf32>
      %37 = arith.addf %34, %36 : vector<128x128xf32>
      %cst_27 = arith.constant dense<0xFF800000> : vector<128xf32>
      %38 = vector.multi_reduction <maximumf>, %37, %cst_27 [1] : vector<128x128xf32> to vector<128xf32>
      %39 = vector.shape_cast %38 : vector<128xf32> to vector<128x1xf32>
      %40 = vector.broadcast %39 : vector<128x1xf32> to vector<128x128xf32>
      %41 = arith.subf %37, %40 : vector<128x128xf32>
      %42 = math.exp %41 : vector<128x128xf32>
      %cst_28 = arith.constant dense<0.000000e+00> : vector<128xf32>
      %43 = vector.multi_reduction <add>, %42, %cst_28 [1] : vector<128x128xf32> to vector<128xf32>
      %44 = vector.shape_cast %43 : vector<128xf32> to vector<128x1xf32>
      %45 = math.log %44 : vector<128x1xf32>
      %46 = vector.broadcast %45 : vector<128x1xf32> to vector<128x128xf32>
      %47 = arith.subf %41, %46 : vector<128x128xf32>
      %c0_29 = arith.constant 0 : index
      %c0_30 = arith.constant 0 : index
      %48 = vector.load %arg10[%c0_29, %c0_30] : memref<128x128xf32, #tpu.memory_space<vmem>>, vector<128x128xf32>
      tpu.vector_store %arg10[%c0_29, %c0_30], %47 {strides = array<i32>} : memref<128x128xf32, #tpu.memory_space<vmem>>, vector<128x128xf32>,
    } else {
    }
    return
  }
  func.func @transform_0(%arg0: i32, %arg1: i32) -> (i32, i32) {
    %c0_i32 = arith.constant 0 : i32
    return %arg0, %arg1 : i32, i32
  }
  func.func @transform_1(%arg0: i32, %arg1: i32) -> (i32, i32) {
    %c0_i32 = arith.constant 0 : i32
    %c0_i32_0 = arith.constant 0 : i32
    %c0_i32_1 = arith.constant 0 : i32
    return %c0_i32, %c0_i32_0 : i32, i32
  }
  func.func @transform_2(%arg0: i32, %arg1: i32) -> (i32, i32) {
    %c0_i32 = arith.constant 0 : i32
    %c0_i32_0 = arith.constant 0 : i32
    return %arg0, %c0_i32 : i32, i32
  }
  func.func @transform_3(%arg0: i32, %arg1: i32) -> (i32, i32) {
    %c0_i32 = arith.constant 0 : i32
    %c0_i32_0 = arith.constant 0 : i32
    %c0_i32_1 = arith.constant 0 : i32
    return %c0_i32, %c0_i32_0 : i32, i32
  }
  func.func @transform_4(%arg0: i32, %arg1: i32) -> (i32, i32) {
    %c0_i32 = arith.constant 0 : i32
    %c0_i32_0 = arith.constant 0 : i32
    %c0_i32_1 = arith.constant 0 : i32
    return %c0_i32, %c0_i32_0 : i32, i32
  }
  func.func @transform_5(%arg0: i32, %arg1: i32) -> (i32, i32) {
    %c0_i32 = arith.constant 0 : i32
    %c0_i32_0 = arith.constant 0 : i32
    %c0_i32_1 = arith.constant 0 : i32
    return %c0_i32, %c0_i32_0 : i32, i32
  }
  func.func @transform_6(%arg0: i32, %arg1: i32) -> (i32, i32) {
    %c0_i32 = arith.constant 0 : i32
    %c0_i32_0 = arith.constant 0 : i32
    %c0_i32_1 = arith.constant 0 : i32
    return %c0_i32, %c0_i32_0 : i32, i32
  }
  func.func @transform_7(%arg0: i32, %arg1: i32) -> (i32, i32) {
    %c0_i32 = arith.constant 0 : i32
    %c0_i32_0 = arith.constant 0 : i32
    %c0_i32_1 = arith.constant 0 : i32
    return %c0_i32, %c0_i32_0 : i32, i32
  }
  func.func @transform_8(%arg0: i32, %arg1: i32) -> (i32, i32) {
    %c0_i32 = arith.constant 0 : i32
    %c0_i32_0 = arith.constant 0 : i32
    return %arg0, %c0_i32 : i32, i32
  }
}

</mosaic_0001>

<llo_original>
// kernel: gnn_mlp_forward.2
$region0: #{gnn_mlp_forward.2}
  #allocation0 [shape = 'u32[]', space=smem, size = 0x4, offset = 0x4, fixed_abs, tag = 'smem constant byte address 0x4 - core index']
  #allocation1 [shape = 'u32[144,128]{1,0:T(1,128)}', space=vmem, size = 0x12000, scoped, tag = 'internal scratch']
  %s0 = inlined_call_operand.vmem [shape: bf16[128,128], index: 0, kind: input, shape index: {}]
  %s1 = inlined_call_operand.vmem [shape: bf16[128,128], index: 1, kind: input, shape index: {}]
  %s2 = inlined_call_operand.vmem [shape: f32[128,1], index: 2, kind: input, shape index: {}]
  %s3 = inlined_call_operand.vmem [shape: bf16[128,128], index: 3, kind: output, shape index: {}]
  %s4 = sld [smem:[#allocation0]]
  $region22: #{gnn_mlp_forward.2} parent=0
    _
  %s6 = ssub.s32 1, %s4
  %s7 = scalar_select 0, %s6, %s4
  // Predicated region
  $region2: #{gnn_mlp_forward.2} parent=0 // pred_check
    _
  $region3: #{gnn_mlp_forward.2} parent=0 // pred_check_branch
    %9 = sbr.rel (0) target = $region5
  $region4: #{gnn_mlp_forward.2} parent=0 // pred_region
    _
  $region5: #{gnn_mlp_forward.2} parent=0 // pred_fallthru
    _
  // Predicated region
  $region6: #{gnn_mlp_forward.2} parent=0 // pred_check
    _
  $region7: #{gnn_mlp_forward.2} parent=0 // pred_check_branch
    %11 = sbr.rel (0) target = $region9
  $region8: #{gnn_mlp_forward.2} parent=0 // pred_region
    _
  $region9: #{gnn_mlp_forward.2} parent=0 // pred_fallthru
    _
  // Predicated region
  $region10: #{gnn_mlp_forward.2} parent=0 // pred_check
    _
  $region11: #{gnn_mlp_forward.2} parent=0 // pred_check_branch
    %13 = sbr.rel (0) target = $region13
  $region12: #{gnn_mlp_forward.2} parent=0 // pred_region
    _
  $region13: #{gnn_mlp_forward.2} parent=0 // pred_fallthru
    _
  %v15 = vld [vmem:[%s0] sm:$0xf]
  %v16 = vld [vmem:[%s0 + $0x4] sm:$0xf]
  %v17 = vld [vmem:[%s0 + $0x8] sm:$0xf]
  %v18 = vld [vmem:[%s0 + $0xc] sm:$0xf]
  %v19 = vld [vmem:[%s0 + $0x10] sm:$0xf]
  %v20 = vld [vmem:[%s0 + $0x14] sm:$0xf]
  %v21 = vld [vmem:[%s0 + $0x18] sm:$0xf]
  %v22 = vld [vmem:[%s0 + $0x1c] sm:$0xf]
  %v23 = vld [vmem:[%s0 + $0x20] sm:$0xf]
  %v24 = vld [vmem:[%s0 + $0x24] sm:$0xf]
  %v25 = vld [vmem:[%s0 + $0x28] sm:$0xf]
  %v26 = vld [vmem:[%s0 + $0x2c] sm:$0xf]
  %v27 = vld [vmem:[%s0 + $0x30] sm:$0xf]
  %v28 = vld [vmem:[%s0 + $0x34] sm:$0xf]
  %v29 = vld [vmem:[%s0 + $0x38] sm:$0xf]
  %v30 = vld [vmem:[%s0 + $0x3c] sm:$0xf]
  %v31 = vld [vmem:[%s1] sm:$0xf]
  %v32 = vld [vmem:[%s1 + $0x4] sm:$0xf]
  %v33 = vld [vmem:[%s1 + $0x8] sm:$0xf]
  %v34 = vld [vmem:[%s1 + $0xc] sm:$0xf]
  %v35 = vld [vmem:[%s1 + $0x10] sm:$0xf]
  %v36 = vld [vmem:[%s1 + $0x14] sm:$0xf]
  %v37 = vld [vmem:[%s1 + $0x18] sm:$0xf]
  %v38 = vld [vmem:[%s1 + $0x1c] sm:$0xf]
  %v39 = vld [vmem:[%s1 + $0x20] sm:$0xf]
  %v40 = vld [vmem:[%s1 + $0x24] sm:$0xf]
  %v41 = vld [vmem:[%s1 + $0x28] sm:$0xf]
  %v42 = vld [vmem:[%s1 + $0x2c] sm:$0xf]
  %v43 = vld [vmem:[%s1 + $0x30] sm:$0xf]
  %v44 = vld [vmem:[%s1 + $0x34] sm:$0xf]
  %v45 = vld [vmem:[%s1 + $0x38] sm:$0xf]
  %v46 = vld [vmem:[%s1 + $0x3c] sm:$0xf]
  %v63 = vunpack.c.l.b16 %v15
  %v64 = vunpack.c.l.b16 %v16
  %v65 = vunpack.c.l.b16 %v17
  %v66 = vunpack.c.l.b16 %v18
  %v67 = vunpack.c.l.b16 %v19
  %v68 = vunpack.c.l.b16 %v20
  %v69 = vunpack.c.l.b16 %v21
  %v70 = vunpack.c.l.b16 %v22
  %v71 = vunpack.c.l.b16 %v23
  %v72 = vunpack.c.l.b16 %v24
  %v73 = vunpack.c.l.b16 %v25
  %v74 = vunpack.c.l.b16 %v26
  %v75 = vunpack.c.l.b16 %v27
  %v76 = vunpack.c.l.b16 %v28
  %v77 = vunpack.c.l.b16 %v29
  %v78 = vunpack.c.l.b16 %v30
  %v79 = vpack.c.b16 %v64, %v63
  %v80 = vpack.c.b16 %v66, %v65
  %v81 = vpack.c.b16 %v68, %v67
  %v82 = vpack.c.b16 %v70, %v69
  %v83 = vpack.c.b16 %v72, %v71
  %v84 = vpack.c.b16 %v74, %v73
  %v85 = vpack.c.b16 %v76, %v75
  %v86 = vpack.c.b16 %v78, %v77
  %v111 = vunpack.c.l.b16 %v31
  %v112 = vunpack.c.l.b16 %v32
  %v113 = vunpack.c.l.b16 %v33
  %v114 = vunpack.c.l.b16 %v34
  %v115 = vunpack.c.l.b16 %v35
  %v116 = vunpack.c.l.b16 %v36
  %v117 = vunpack.c.l.b16 %v37
  %v118 = vunpack.c.l.b16 %v38
  %v119 = vunpack.c.l.b16 %v39
  %v120 = vunpack.c.l.b16 %v40
  %v121 = vunpack.c.l.b16 %v41
  %v122 = vunpack.c.l.b16 %v42
  %v123 = vunpack.c.l.b16 %v43
  %v124 = vunpack.c.l.b16 %v44
  %v125 = vunpack.c.l.b16 %v45
  %v126 = vunpack.c.l.b16 %v46
  %v127 = vpack.c.b16 %v112, %v111
  %v128 = vpack.c.b16 %v114, %v113
  %v129 = vpack.c.b16 %v116, %v115
  %v130 = vpack.c.b16 %v118, %v117
  %v131 = vpack.c.b16 %v120, %v119
  %v132 = vpack.c.b16 %v122, %v121
  %v133 = vpack.c.b16 %v124, %v123
  %v134 = vpack.c.b16 %v126, %v125
  %143 = vmatprep.subr.bf16.mxu0 0
  %144 = vmatpush1.bf16.msra.mxu0 %v134
  %145 = vmatprep.subr.bf16.mxu0 0
  %146 = vmatpush1.bf16.msra.mxu0 %v133
  %147 = vmatprep.subr.bf16.mxu0 0
  %148 = vmatpush1.bf16.msra.mxu0 %v132
  %149 = vmatprep.subr.bf16.mxu0 0
  %150 = vmatpush1.bf16.msra.mxu0 %v131
  %151 = vmatprep.subr.bf16.mxu0 0
  %152 = vmatpush1.bf16.msra.mxu0 %v130
  %153 = vmatprep.subr.bf16.mxu0 0
  %154 = vmatpush1.bf16.msra.mxu0 %v129
  %155 = vmatprep.subr.bf16.mxu0 0
  %156 = vmatpush1.bf16.msra.mxu0 %v128
  %157 = vmatprep.subr.bf16.mxu0 0
  %158 = vmatpush1.bf16.msra.mxu0 %v127
  %159 = vmatprep.subr.bf16.mxu0 0
  %160 = vmatpush2.bf16.msra.mxu0 0
  %161 = vmatprep.subr.bf16.mxu0 0
  %162 = vmatpush2.bf16.msra.mxu0 0
  %163 = vmatprep.subr.bf16.mxu0 0
  %164 = vmatpush2.bf16.msra.mxu0 0
  %165 = vmatprep.subr.bf16.mxu0 0
  %166 = vmatpush2.bf16.msra.mxu0 0
  %167 = vmatprep.subr.bf16.mxu0 0
  %168 = vmatpush2.bf16.msra.mxu0 0
  %169 = vmatprep.subr.bf16.mxu0 0
  %170 = vmatpush2.bf16.msra.mxu0 0
  %171 = vmatprep.subr.bf16.mxu0 0
  %172 = vmatpush2.bf16.msra.mxu0 0
  %173 = vmatprep.subr.bf16.mxu0 0
  %174 = vmatpush2.bf16.msra.mxu0 0
  %175 = vmatprep.mubr.bf16.mxu0 0
  %176 = vmatmul.mubr.bf16.gmra.mxu0 %v79
  %v177 = vpop.f32.mrf.mxu0
  %v178 = vadd.f32 0.0, %v177
  %v179 = vpop.f32.mrf.mxu0
  %v180 = vpop.f32.mrf.mxu0
  %v181 = vadd.f32 0.0, %v180
  %v182 = vpop.f32.mrf.mxu0
  %183 = vmatprep.mubr.bf16.mxu0 0
  %184 = vmatmul.mubr.bf16.gmra.mxu0 %v80
  %v185 = vpop.f32.mrf.mxu0
  %v186 = vadd.f32 0.0, %v185
  %v187 = vpop.f32.mrf.mxu0
  %v188 = vpop.f32.mrf.mxu0
  %v189 = vadd.f32 0.0, %v188
  %v190 = vpop.f32.mrf.mxu0
  %191 = vmatprep.mubr.bf16.mxu0 0
  %192 = vmatmul.mubr.bf16.gmra.mxu0 %v81
  %v193 = vpop.f32.mrf.mxu0
  %v194 = vadd.f32 0.0, %v193
  %v195 = vpop.f32.mrf.mxu0
  %v196 = vpop.f32.mrf.mxu0
  %v197 = vadd.f32 0.0, %v196
  %v198 = vpop.f32.mrf.mxu0
  %199 = vmatprep.mubr.bf16.mxu0 0
  %200 = vmatmul.mubr.bf16.gmra.mxu0 %v82
  %v201 = vpop.f32.mrf.mxu0
  %v202 = vadd.f32 0.0, %v201
  %v203 = vpop.f32.mrf.mxu0
  %v204 = vpop.f32.mrf.mxu0
  %v205 = vadd.f32 0.0, %v204
  %v206 = vpop.f32.mrf.mxu0
  %207 = vmatprep.mubr.bf16.mxu0 0
  %208 = vmatmul.mubr.bf16.gmra.mxu0 %v83
  %v209 = vpop.f32.mrf.mxu0
  %v210 = vadd.f32 0.0, %v209
  %v211 = vpop.f32.mrf.mxu0
  %v212 = vpop.f32.mrf.mxu0
  %v213 = vadd.f32 0.0, %v212
  %v214 = vpop.f32.mrf.mxu0
  %215 = vmatprep.mubr.bf16.mxu0 0
  %216 = vmatmul.mubr.bf16.gmra.mxu0 %v84
  %v217 = vpop.f32.mrf.mxu0
  %v218 = vadd.f32 0.0, %v217
  %v219 = vpop.f32.mrf.mxu0
  %v220 = vpop.f32.mrf.mxu0
  %v221 = vadd.f32 0.0, %v220
  %v222 = vpop.f32.mrf.mxu0
  %223 = vmatprep.mubr.bf16.mxu0 0
  %224 = vmatmul.mubr.bf16.gmra.mxu0 %v85
  %v225 = vpop.f32.mrf.mxu0
  %v226 = vadd.f32 0.0, %v225
  %v227 = vpop.f32.mrf.mxu0
  %v228 = vpop.f32.mrf.mxu0
  %v229 = vadd.f32 0.0, %v228
  %v230 = vpop.f32.mrf.mxu0
  %231 = vmatprep.mubr.bf16.mxu0 0
  %232 = vmatmul.mubr.bf16.gmra.mxu0 %v86
  %v233 = vpop.f32.mrf.mxu0
  %v234 = vadd.f32 0.0, %v233
  %v235 = vpop.f32.mrf.mxu0
  %v236 = vpop.f32.mrf.mxu0
  %v237 = vadd.f32 0.0, %v236
  %v238 = vpop.f32.mrf.mxu0
  %239 = vdwg.mxu0
  %v240 = vld [vmem:[%s2] sm:$0xff]
  %v241 = vld [vmem:[%s2 + $0x8] sm:$0xff]
  %v242 = vld [vmem:[%s2 + $0x10] sm:$0xff]
  %v243 = vld [vmem:[%s2 + $0x18] sm:$0xff]
  %v244 = vld [vmem:[%s2 + $0x20] sm:$0xff]
  %v245 = vld [vmem:[%s2 + $0x28] sm:$0xff]
  %v246 = vld [vmem:[%s2 + $0x30] sm:$0xff]
  %v247 = vld [vmem:[%s2 + $0x38] sm:$0xff]
  %v248 = vld [vmem:[%s2 + $0x40] sm:$0xff]
  %v249 = vld [vmem:[%s2 + $0x48] sm:$0xff]
  %v250 = vld [vmem:[%s2 + $0x50] sm:$0xff]
  %v251 = vld [vmem:[%s2 + $0x58] sm:$0xff]
  %v252 = vld [vmem:[%s2 + $0x60] sm:$0xff]
  %v253 = vld [vmem:[%s2 + $0x68] sm:$0xff]
  %v254 = vld [vmem:[%s2 + $0x70] sm:$0xff]
  %v255 = vld [vmem:[%s2 + $0x78] sm:$0xff]
  %257 = vset.pattern.permute.xlu0 0
  %258 = vperm.xlu0 %257, %v240
  %v259 = vpop.permute.xlu0 %258
  %262 = vset.pattern.permute.xlu0 0
  %263 = vperm.xlu0 %262, %v241
  %v264 = vpop.permute.xlu0 %263
  %267 = vset.pattern.permute.xlu0 0
  %268 = vperm.xlu0 %267, %v242
  %v269 = vpop.permute.xlu0 %268
  %272 = vset.pattern.permute.xlu0 0
  %273 = vperm.xlu0 %272, %v243
  %v274 = vpop.permute.xlu0 %273
  %277 = vset.pattern.permute.xlu0 0
  %278 = vperm.xlu0 %277, %v244
  %v279 = vpop.permute.xlu0 %278
  %282 = vset.pattern.permute.xlu0 0
  %283 = vperm.xlu0 %282, %v245
  %v284 = vpop.permute.xlu0 %283
  %287 = vset.pattern.permute.xlu0 0
  %288 = vperm.xlu0 %287, %v246
  %v289 = vpop.permute.xlu0 %288
  %292 = vset.pattern.permute.xlu0 0
  %293 = vperm.xlu0 %292, %v247
  %v294 = vpop.permute.xlu0 %293
  %297 = vset.pattern.permute.xlu0 0
  %298 = vperm.xlu0 %297, %v248
  %v299 = vpop.permute.xlu0 %298
  %302 = vset.pattern.permute.xlu0 0
  %303 = vperm.xlu0 %302, %v249
  %v304 = vpop.permute.xlu0 %303
  %307 = vset.pattern.permute.xlu0 0
  %308 = vperm.xlu0 %307, %v250
  %v309 = vpop.permute.xlu0 %308
  %312 = vset.pattern.permute.xlu0 0
  %313 = vperm.xlu0 %312, %v251
  %v314 = vpop.permute.xlu0 %313
  %317 = vset.pattern.permute.xlu0 0
  %318 = vperm.xlu0 %317, %v252
  %v319 = vpop.permute.xlu0 %318
  %322 = vset.pattern.permute.xlu0 0
  %323 = vperm.xlu0 %322, %v253
  %v324 = vpop.permute.xlu0 %323
  %327 = vset.pattern.permute.xlu0 0
  %328 = vperm.xlu0 %327, %v254
  %v329 = vpop.permute.xlu0 %328
  %332 = vset.pattern.permute.xlu0 0
  %333 = vperm.xlu0 %332, %v255
  %v334 = vpop.permute.xlu0 %333
  %v336 = vmul.f32 %v178, %v259
  %v337 = vmul.f32 %v181, %v264
  %v338 = vmul.f32 %v186, %v269
  %v339 = vmul.f32 %v189, %v274
  %v340 = vmul.f32 %v194, %v279
  %v341 = vmul.f32 %v197, %v284
  %v342 = vmul.f32 %v202, %v289
  %v343 = vmul.f32 %v205, %v294
  %v344 = vmul.f32 %v210, %v299
  %v345 = vmul.f32 %v213, %v304
  %v346 = vmul.f32 %v218, %v309
  %v347 = vmul.f32 %v221, %v314
  %v348 = vmul.f32 %v226, %v319
  %v349 = vmul.f32 %v229, %v324
  %v350 = vmul.f32 %v234, %v329
  %v351 = vmul.f32 %v237, %v334
  %v352 = vpack.c.bf16 %v337, %v336
  %v353 = vpack.c.bf16 %v339, %v338
  %v354 = vpack.c.bf16 %v341, %v340
  %v355 = vpack.c.bf16 %v343, %v342
  %v356 = vpack.c.bf16 %v345, %v344
  %v357 = vpack.c.bf16 %v347, %v346
  %v358 = vpack.c.bf16 %v349, %v348
  %v359 = vpack.c.bf16 %v351, %v350
  %v368 = vunpack.c.l.b16 %v352
  %v369 = vunpack.c.h.b16 %v352
  %v370 = vunpack.c.l.b16 %v353
  %v371 = vunpack.c.h.b16 %v353
  %v372 = vunpack.c.l.b16 %v354
  %v373 = vunpack.c.h.b16 %v354
  %v374 = vunpack.c.l.b16 %v355
  %v375 = vunpack.c.h.b16 %v355
  %v376 = vunpack.c.l.b16 %v356
  %v377 = vunpack.c.h.b16 %v356
  %v378 = vunpack.c.l.b16 %v357
  %v379 = vunpack.c.h.b16 %v357
  %v380 = vunpack.c.l.b16 %v358
  %v381 = vunpack.c.h.b16 %v358
  %v382 = vunpack.c.l.b16 %v359
  %v383 = vunpack.c.h.b16 %v359
  %v384 = vpack.c.b16 %v368, %v368
  %v385 = vpack.c.b16 %v369, %v369
  %v386 = vpack.c.b16 %v370, %v370
  %v387 = vpack.c.b16 %v371, %v371
  %v388 = vpack.c.b16 %v372, %v372
  %v389 = vpack.c.b16 %v373, %v373
  %v390 = vpack.c.b16 %v374, %v374
  %v391 = vpack.c.b16 %v375, %v375
  %v392 = vpack.c.b16 %v376, %v376
  %v393 = vpack.c.b16 %v377, %v377
  %v394 = vpack.c.b16 %v378, %v378
  %v395 = vpack.c.b16 %v379, %v379
  %v396 = vpack.c.b16 %v380, %v380
  %v397 = vpack.c.b16 %v381, %v381
  %v398 = vpack.c.b16 %v382, %v382
  %v399 = vpack.c.b16 %v383, %v383
  %416 = vst [vmem:[%s3] sm:$0xf] %v384
  %417 = vst [vmem:[%s3 + $0x4] sm:$0xf] %v385
  %418 = vst [vmem:[%s3 + $0x8] sm:$0xf] %v386
  %419 = vst [vmem:[%s3 + $0xc] sm:$0xf] %v387
  %420 = vst [vmem:[%s3 + $0x10] sm:$0xf] %v388
  %421 = vst [vmem:[%s3 + $0x14] sm:$0xf] %v389
  %422 = vst [vmem:[%s3 + $0x18] sm:$0xf] %v390
  %423 = vst [vmem:[%s3 + $0x1c] sm:$0xf] %v391
  %424 = vst [vmem:[%s3 + $0x20] sm:$0xf] %v392
  %425 = vst [vmem:[%s3 + $0x24] sm:$0xf] %v393
  %426 = vst [vmem:[%s3 + $0x28] sm:$0xf] %v394
  %427 = vst [vmem:[%s3 + $0x2c] sm:$0xf] %v395
  %428 = vst [vmem:[%s3 + $0x30] sm:$0xf] %v396
  %429 = vst [vmem:[%s3 + $0x34] sm:$0xf] %v397
  %430 = vst [vmem:[%s3 + $0x38] sm:$0xf] %v398
  %431 = vst [vmem:[%s3 + $0x3c] sm:$0xf] %v399
  // Predicated region
  $region14: #{gnn_mlp_forward.2} parent=0 // pred_check
    _
  $region15: #{gnn_mlp_forward.2} parent=0 // pred_check_branch
    %433 = sbr.rel (0) target = $region17
  $region16: #{gnn_mlp_forward.2} parent=0 // pred_region
    _
  $region17: #{gnn_mlp_forward.2} parent=0 // pred_fallthru
    _
  // Predicated region
  $region18: #{gnn_mlp_forward.2} parent=0 // pred_check
    _
  $region19: #{gnn_mlp_forward.2} parent=0 // pred_check_branch
    %435 = sbr.rel (0) target = $region21
  $region20: #{gnn_mlp_forward.2} parent=0 // pred_region
    _
  $region21: #{gnn_mlp_forward.2} parent=0 // pred_fallthru
    _

// kernel: gnn_mlp_forward.3
$region0: #{gnn_mlp_forward.3}
  #allocation0 [shape = 'u32[]', space=smem, size = 0x4, offset = 0x4, fixed_abs, tag = 'smem constant byte address 0x4 - core index']
  #allocation1 [shape = 'u32[144,128]{1,0:T(1,128)}', space=vmem, size = 0x12000, scoped, tag = 'internal scratch']
  #allocation2 [shape = 'f32[128,128]{1,0:T(8,128)}', space=vmem, size = 0x10000, scoped, tag = 'scratch operand']
  %s0 = inlined_call_operand.vmem [shape: bf16[128,128], index: 0, kind: input, shape index: {}]
  %s1 = inlined_call_operand.vmem [shape: bf16[128,128], index: 1, kind: input, shape index: {}]
  %s2 = inlined_call_operand.vmem [shape: f32[128,1], index: 2, kind: input, shape index: {}]
  %s3 = inlined_call_operand.vmem [shape: f32[1,128], index: 3, kind: input, shape index: {}]
  %s4 = inlined_call_operand.vmem [shape: bf16[128,128], index: 4, kind: input, shape index: {}]
  %s5 = inlined_call_operand.vmem [shape: f32[1,128], index: 5, kind: input, shape index: {}]
  %s6 = inlined_call_operand.vmem [shape: bf16[128,128], index: 6, kind: input, shape index: {}]
  %s7 = inlined_call_operand.vmem [shape: f32[1,128], index: 7, kind: input, shape index: {}]
  %s8 = inlined_call_operand.vmem [shape: f32[128,128], index: 8, kind: output, shape index: {}]
  %s9 = sld [smem:[#allocation0]]
  $region50: #{gnn_mlp_forward.3} parent=0
    _
  %s11 = ssub.s32 1, %s9
  %s12 = scalar_select 0, %s11, %s9
  // Predicated region
  $region2: #{gnn_mlp_forward.3} parent=0 // pred_check
    _
  $region3: #{gnn_mlp_forward.3} parent=0 // pred_check_branch
    %14 = sbr.rel (0) target = $region5
  $region4: #{gnn_mlp_forward.3} parent=0 // pred_region
    _
  $region5: #{gnn_mlp_forward.3} parent=0 // pred_fallthru
    _
  // Predicated region
  $region6: #{gnn_mlp_forward.3} parent=0 // pred_check
    _
  $region7: #{gnn_mlp_forward.3} parent=0 // pred_check_branch
    %16 = sbr.rel (0) target = $region9
  $region8: #{gnn_mlp_forward.3} parent=0 // pred_region
    _
  $region9: #{gnn_mlp_forward.3} parent=0 // pred_fallthru
    _
  // Predicated region
  $region10: #{gnn_mlp_forward.3} parent=0 // pred_check
    _
  $region11: #{gnn_mlp_forward.3} parent=0 // pred_check_branch
    %18 = sbr.rel (0) target = $region13
  $region12: #{gnn_mlp_forward.3} parent=0 // pred_region
    _
  $region13: #{gnn_mlp_forward.3} parent=0 // pred_fallthru
    _
  // Predicated region
  $region14: #{gnn_mlp_forward.3} parent=0 // pred_check
    _
  $region15: #{gnn_mlp_forward.3} parent=0 // pred_check_branch
    %20 = sbr.rel (0) target = $region17
  $region16: #{gnn_mlp_forward.3} parent=0 // pred_region
    _
  $region17: #{gnn_mlp_forward.3} parent=0 // pred_fallthru
    _
  // Predicated region
  $region18: #{gnn_mlp_forward.3} parent=0 // pred_check
    _
  $region19: #{gnn_mlp_forward.3} parent=0 // pred_check_branch
    %22 = sbr.rel (0) target = $region21
  $region20: #{gnn_mlp_forward.3} parent=0 // pred_region
    _
  $region21: #{gnn_mlp_forward.3} parent=0 // pred_fallthru
    _
  // Predicated region
  $region22: #{gnn_mlp_forward.3} parent=0 // pred_check
    _
  $region23: #{gnn_mlp_forward.3} parent=0 // pred_check_branch
    %24 = sbr.rel (0) target = $region25
  $region24: #{gnn_mlp_forward.3} parent=0 // pred_region
    _
  $region25: #{gnn_mlp_forward.3} parent=0 // pred_fallthru
    _
  // Predicated region
  $region26: #{gnn_mlp_forward.3} parent=0 // pred_check
    _
  $region27: #{gnn_mlp_forward.3} parent=0 // pred_check_branch
    %26 = sbr.rel (0) target = $region29
  $region28: #{gnn_mlp_forward.3} parent=0 // pred_region
    _
  $region29: #{gnn_mlp_forward.3} parent=0 // pred_fallthru
    _
  // Predicated region
  $region30: #{gnn_mlp_forward.3} parent=0 // pred_check
    _
  $region31: #{gnn_mlp_forward.3} parent=0 // pred_check_branch
    %28 = sbr.rel (0) target = $region33
  $region32: #{gnn_mlp_forward.3} parent=0 // pred_region
    _
  $region33: #{gnn_mlp_forward.3} parent=0 // pred_fallthru
    _
  %p30 = scmp.eq.s32.totalorder 0, 0
  // Predicated region
  $region34: #{gnn_mlp_forward.3} parent=0 // pred_check
    %p31 = pneg %p30
  $region35: #{gnn_mlp_forward.3} parent=0 // pred_check_branch
    %33 = sbr.rel (%p31) target = $region37
  $region36: #{gnn_mlp_forward.3} parent=0 // pred_region
    %34 = vst [vmem:[#allocation2] sm:$0xff] 0.0
    %35 = vst [vmem:[#allocation2 + $0x8] sm:$0xff] 0.0
    %36 = vst [vmem:[#allocation2 + $0x10] sm:$0xff] 0.0
    %37 = vst [vmem:[#allocation2 + $0x18] sm:$0xff] 0.0
    %38 = vst [vmem:[#allocation2 + $0x20] sm:$0xff] 0.0
    %39 = vst [vmem:[#allocation2 + $0x28] sm:$0xff] 0.0
    %40 = vst [vmem:[#allocation2 + $0x30] sm:$0xff] 0.0
    %41 = vst [vmem:[#allocation2 + $0x38] sm:$0xff] 0.0
    %42 = vst [vmem:[#allocation2 + $0x40] sm:$0xff] 0.0
    %43 = vst [vmem:[#allocation2 + $0x48] sm:$0xff] 0.0
    %44 = vst [vmem:[#allocation2 + $0x50] sm:$0xff] 0.0
    %45 = vst [vmem:[#allocation2 + $0x58] sm:$0xff] 0.0
    %46 = vst [vmem:[#allocation2 + $0x60] sm:$0xff] 0.0
    %47 = vst [vmem:[#allocation2 + $0x68] sm:$0xff] 0.0
    %48 = vst [vmem:[#allocation2 + $0x70] sm:$0xff] 0.0
    %49 = vst [vmem:[#allocation2 + $0x78] sm:$0xff] 0.0
  $region37: #{gnn_mlp_forward.3} parent=0 // pred_fallthru
    _
  %s50 = smul.u32 0, 128
  %v51 = vld [vmem:[#allocation2] sm:$0xff]
  %v52 = vld [vmem:[#allocation2 + $0x8] sm:$0xff]
  %v53 = vld [vmem:[#allocation2 + $0x10] sm:$0xff]
  %v54 = vld [vmem:[#allocation2 + $0x18] sm:$0xff]
  %v55 = vld [vmem:[#allocation2 + $0x20] sm:$0xff]
  %v56 = vld [vmem:[#allocation2 + $0x28] sm:$0xff]
  %v57 = vld [vmem:[#allocation2 + $0x30] sm:$0xff]
  %v58 = vld [vmem:[#allocation2 + $0x38] sm:$0xff]
  %v59 = vld [vmem:[#allocation2 + $0x40] sm:$0xff]
  %v60 = vld [vmem:[#allocation2 + $0x48] sm:$0xff]
  %v61 = vld [vmem:[#allocation2 + $0x50] sm:$0xff]
  %v62 = vld [vmem:[#allocation2 + $0x58] sm:$0xff]
  %v63 = vld [vmem:[#allocation2 + $0x60] sm:$0xff]
  %v64 = vld [vmem:[#allocation2 + $0x68] sm:$0xff]
  %v65 = vld [vmem:[#allocation2 + $0x70] sm:$0xff]
  %v66 = vld [vmem:[#allocation2 + $0x78] sm:$0xff]
  %v67 = vld [vmem:[%s0] sm:$0xf]
  %v68 = vld [vmem:[%s0 + $0x4] sm:$0xf]
  %v69 = vld [vmem:[%s0 + $0x8] sm:$0xf]
  %v70 = vld [vmem:[%s0 + $0xc] sm:$0xf]
  %v71 = vld [vmem:[%s0 + $0x10] sm:$0xf]
  %v72 = vld [vmem:[%s0 + $0x14] sm:$0xf]
  %v73 = vld [vmem:[%s0 + $0x18] sm:$0xf]
  %v74 = vld [vmem:[%s0 + $0x1c] sm:$0xf]
  %v75 = vld [vmem:[%s0 + $0x20] sm:$0xf]
  %v76 = vld [vmem:[%s0 + $0x24] sm:$0xf]
  %v77 = vld [vmem:[%s0 + $0x28] sm:$0xf]
  %v78 = vld [vmem:[%s0 + $0x2c] sm:$0xf]
  %v79 = vld [vmem:[%s0 + $0x30] sm:$0xf]
  %v80 = vld [vmem:[%s0 + $0x34] sm:$0xf]
  %v81 = vld [vmem:[%s0 + $0x38] sm:$0xf]
  %v82 = vld [vmem:[%s0 + $0x3c] sm:$0xf]
  %s83 = sshra.s32 %s50, 3
  %s84 = sand.u32 %s50, 7
  %s85 = smul.addr %s83, 4
  %s86 = scalar_lea.vmem %s1, %s85
  %v87 = vld [vmem:[%s86] sm:$0xf]
  %v88 = vld [vmem:[%s86 + $0x4] sm:$0xf]
  %v89 = vld [vmem:[%s86 + $0x8] sm:$0xf]
  %v90 = vld [vmem:[%s86 + $0xc] sm:$0xf]
  %v91 = vld [vmem:[%s86 + $0x10] sm:$0xf]
  %v92 = vld [vmem:[%s86 + $0x14] sm:$0xf]
  %v93 = vld [vmem:[%s86 + $0x18] sm:$0xf]
  %v94 = vld [vmem:[%s86 + $0x1c] sm:$0xf]
  %v95 = vld [vmem:[%s86 + $0x20] sm:$0xf]
  %v96 = vld [vmem:[%s86 + $0x24] sm:$0xf]
  %v97 = vld [vmem:[%s86 + $0x28] sm:$0xf]
  %v98 = vld [vmem:[%s86 + $0x2c] sm:$0xf]
  %v99 = vld [vmem:[%s86 + $0x30] sm:$0xf]
  %v100 = vld [vmem:[%s86 + $0x34] sm:$0xf]
  %v101 = vld [vmem:[%s86 + $0x38] sm:$0xf]
  %v102 = vld [vmem:[%s86 + $0x3c] sm:$0xf]
  %v119 = vunpack.c.l.b16 %v67
  %v120 = vunpack.c.l.b16 %v68
  %v121 = vunpack.c.l.b16 %v69
  %v122 = vunpack.c.l.b16 %v70
  %v123 = vunpack.c.l.b16 %v71
  %v124 = vunpack.c.l.b16 %v72
  %v125 = vunpack.c.l.b16 %v73
  %v126 = vunpack.c.l.b16 %v74
  %v127 = vunpack.c.l.b16 %v75
  %v128 = vunpack.c.l.b16 %v76
  %v129 = vunpack.c.l.b16 %v77
  %v130 = vunpack.c.l.b16 %v78
  %v131 = vunpack.c.l.b16 %v79
  %v132 = vunpack.c.l.b16 %v80
  %v133 = vunpack.c.l.b16 %v81
  %v134 = vunpack.c.l.b16 %v82
  %v135 = vpack.c.b16 %v120, %v119
  %v136 = vpack.c.b16 %v122, %v121
  %v137 = vpack.c.b16 %v124, %v123
  %v138 = vpack.c.b16 %v126, %v125
  %v139 = vpack.c.b16 %v128, %v127
  %v140 = vpack.c.b16 %v130, %v129
  %v141 = vpack.c.b16 %v132, %v131
  %v142 = vpack.c.b16 %v134, %v133
  %v167 = vunpack.c.l.b16 %v87
  %v168 = vunpack.c.l.b16 %v88
  %v169 = vunpack.c.l.b16 %v89
  %v170 = vunpack.c.l.b16 %v90
  %v171 = vunpack.c.l.b16 %v91
  %v172 = vunpack.c.l.b16 %v92
  %v173 = vunpack.c.l.b16 %v93
  %v174 = vunpack.c.l.b16 %v94
  %v175 = vunpack.c.l.b16 %v95
  %v176 = vunpack.c.l.b16 %v96
  %v177 = vunpack.c.l.b16 %v97
  %v178 = vunpack.c.l.b16 %v98
  %v179 = vunpack.c.l.b16 %v99
  %v180 = vunpack.c.l.b16 %v100
  %v181 = vunpack.c.l.b16 %v101
  %v182 = vunpack.c.l.b16 %v102
  %v183 = vpack.c.b16 %v168, %v167
  %v184 = vpack.c.b16 %v170, %v169
  %v185 = vpack.c.b16 %v172, %v171
  %v186 = vpack.c.b16 %v174, %v173
  %v187 = vpack.c.b16 %v176, %v175
  %v188 = vpack.c.b16 %v178, %v177
  %v189 = vpack.c.b16 %v180, %v179
  %v190 = vpack.c.b16 %v182, %v181
  %199 = vmatprep.subr.bf16.mxu0 0
  %200 = vmatpush1.bf16.msra.mxu0 %v190
  %201 = vmatprep.subr.bf16.mxu0 0
  %202 = vmatpush1.bf16.msra.mxu0 %v189
  %203 = vmatprep.subr.bf16.mxu0 0
  %204 = vmatpush1.bf16.msra.mxu0 %v188
  %205 = vmatprep.subr.bf16.mxu0 0
  %206 = vmatpush1.bf16.msra.mxu0 %v187
  %207 = vmatprep.subr.bf16.mxu0 0
  %208 = vmatpush1.bf16.msra.mxu0 %v186
  %209 = vmatprep.subr.bf16.mxu0 0
  %210 = vmatpush1.bf16.msra.mxu0 %v185
  %211 = vmatprep.subr.bf16.mxu0 0
  %212 = vmatpush1.bf16.msra.mxu0 %v184
  %213 = vmatprep.subr.bf16.mxu0 0
  %214 = vmatpush1.bf16.msra.mxu0 %v183
  %215 = vmatprep.subr.bf16.mxu0 0
  %216 = vmatpush2.bf16.msra.mxu0 0
  %217 = vmatprep.subr.bf16.mxu0 0
  %218 = vmatpush2.bf16.msra.mxu0 0
  %219 = vmatprep.subr.bf16.mxu0 0
  %220 = vmatpush2.bf16.msra.mxu0 0
  %221 = vmatprep.subr.bf16.mxu0 0
  %222 = vmatpush2.bf16.msra.mxu0 0
  %223 = vmatprep.subr.bf16.mxu0 0
  %224 = vmatpush2.bf16.msra.mxu0 0
  %225 = vmatprep.subr.bf16.mxu0 0
  %226 = vmatpush2.bf16.msra.mxu0 0
  %227 = vmatprep.subr.bf16.mxu0 0
  %228 = vmatpush2.bf16.msra.mxu0 0
  %229 = vmatprep.subr.bf16.mxu0 0
  %230 = vmatpush2.bf16.msra.mxu0 0
  %231 = vmatprep.mubr.bf16.mxu0 0
  %232 = vmatmul.mubr.bf16.gmra.mxu0 %v135
  %v233 = vpop.f32.mrf.mxu0
  %v234 = vadd.f32 0.0, %v233
  %v235 = vpop.f32.mrf.mxu0
  %v236 = vpop.f32.mrf.mxu0
  %v237 = vadd.f32 0.0, %v236
  %v238 = vpop.f32.mrf.mxu0
  %239 = vmatprep.mubr.bf16.mxu0 0
  %240 = vmatmul.mubr.bf16.gmra.mxu0 %v136
  %v241 = vpop.f32.mrf.mxu0
  %v242 = vadd.f32 0.0, %v241
  %v243 = vpop.f32.mrf.mxu0
  %v244 = vpop.f32.mrf.mxu0
  %v245 = vadd.f32 0.0, %v244
  %v246 = vpop.f32.mrf.mxu0
  %247 = vmatprep.mubr.bf16.mxu0 0
  %248 = vmatmul.mubr.bf16.gmra.mxu0 %v137
  %v249 = vpop.f32.mrf.mxu0
  %v250 = vadd.f32 0.0, %v249
  %v251 = vpop.f32.mrf.mxu0
  %v252 = vpop.f32.mrf.mxu0
  %v253 = vadd.f32 0.0, %v252
  %v254 = vpop.f32.mrf.mxu0
  %255 = vmatprep.mubr.bf16.mxu0 0
  %256 = vmatmul.mubr.bf16.gmra.mxu0 %v138
  %v257 = vpop.f32.mrf.mxu0
  %v258 = vadd.f32 0.0, %v257
  %v259 = vpop.f32.mrf.mxu0
  %v260 = vpop.f32.mrf.mxu0
  %v261 = vadd.f32 0.0, %v260
  %v262 = vpop.f32.mrf.mxu0
  %263 = vmatprep.mubr.bf16.mxu0 0
  %264 = vmatmul.mubr.bf16.gmra.mxu0 %v139
  %v265 = vpop.f32.mrf.mxu0
  %v266 = vadd.f32 0.0, %v265
  %v267 = vpop.f32.mrf.mxu0
  %v268 = vpop.f32.mrf.mxu0
  %v269 = vadd.f32 0.0, %v268
  %v270 = vpop.f32.mrf.mxu0
  %271 = vmatprep.mubr.bf16.mxu0 0
  %272 = vmatmul.mubr.bf16.gmra.mxu0 %v140
  %v273 = vpop.f32.mrf.mxu0
  %v274 = vadd.f32 0.0, %v273
  %v275 = vpop.f32.mrf.mxu0
  %v276 = vpop.f32.mrf.mxu0
  %v277 = vadd.f32 0.0, %v276
  %v278 = vpop.f32.mrf.mxu0
  %279 = vmatprep.mubr.bf16.mxu0 0
  %280 = vmatmul.mubr.bf16.gmra.mxu0 %v141
  %v281 = vpop.f32.mrf.mxu0
  %v282 = vadd.f32 0.0, %v281
  %v283 = vpop.f32.mrf.mxu0
  %v284 = vpop.f32.mrf.mxu0
  %v285 = vadd.f32 0.0, %v284
  %v286 = vpop.f32.mrf.mxu0
  %287 = vmatprep.mubr.bf16.mxu0 0
  %288 = vmatmul.mubr.bf16.gmra.mxu0 %v142
  %v289 = vpop.f32.mrf.mxu0
  %v290 = vadd.f32 0.0, %v289
  %v291 = vpop.f32.mrf.mxu0
  %v292 = vpop.f32.mrf.mxu0
  %v293 = vadd.f32 0.0, %v292
  %v294 = vpop.f32.mrf.mxu0
  %295 = vdwg.mxu0
  %v296 = vadd.f32 %v51, %v234
  %v297 = vadd.f32 %v52, %v237
  %v298 = vadd.f32 %v53, %v242
  %v299 = vadd.f32 %v54, %v245
  %v300 = vadd.f32 %v55, %v250
  %v301 = vadd.f32 %v56, %v253
  %v302 = vadd.f32 %v57, %v258
  %v303 = vadd.f32 %v58, %v261
  %v304 = vadd.f32 %v59, %v266
  %v305 = vadd.f32 %v60, %v269
  %v306 = vadd.f32 %v61, %v274
  %v307 = vadd.f32 %v62, %v277
  %v308 = vadd.f32 %v63, %v282
  %v309 = vadd.f32 %v64, %v285
  %v310 = vadd.f32 %v65, %v290
  %v311 = vadd.f32 %v66, %v293
  %312 = vst [vmem:[#allocation2] sm:$0xff] %v296
  %313 = vst [vmem:[#allocation2 + $0x8] sm:$0xff] %v297
  %314 = vst [vmem:[#allocation2 + $0x10] sm:$0xff] %v298
  %315 = vst [vmem:[#allocation2 + $0x18] sm:$0xff] %v299
  %316 = vst [vmem:[#allocation2 + $0x20] sm:$0xff] %v300
  %317 = vst [vmem:[#allocation2 + $0x28] sm:$0xff] %v301
  %318 = vst [vmem:[#allocation2 + $0x30] sm:$0xff] %v302
  %319 = vst [vmem:[#allocation2 + $0x38] sm:$0xff] %v303
  %320 = vst [vmem:[#allocation2 + $0x40] sm:$0xff] %v304
  %321 = vst [vmem:[#allocation2 + $0x48] sm:$0xff] %v305
  %322 = vst [vmem:[#allocation2 + $0x50] sm:$0xff] %v306
  %323 = vst [vmem:[#allocation2 + $0x58] sm:$0xff] %v307
  %324 = vst [vmem:[#allocation2 + $0x60] sm:$0xff] %v308
  %325 = vst [vmem:[#allocation2 + $0x68] sm:$0xff] %v309
  %326 = vst [vmem:[#allocation2 + $0x70] sm:$0xff] %v310
  %327 = vst [vmem:[#allocation2 + $0x78] sm:$0xff] %v311
  // Predicated region
  $region38: #{gnn_mlp_forward.3} parent=0 // pred_check
    %p328 = pneg %p30
  $region39: #{gnn_mlp_forward.3} parent=0 // pred_check_branch
    %330 = sbr.rel (%p328) target = $region41
  $region40: #{gnn_mlp_forward.3} parent=0 // pred_region
    %v331 = vld [vmem:[#allocation2] sm:$0xff]
    %v332 = vld [vmem:[#allocation2 + $0x8] sm:$0xff]
    %v333 = vld [vmem:[#allocation2 + $0x10] sm:$0xff]
    %v334 = vld [vmem:[#allocation2 + $0x18] sm:$0xff]
    %v335 = vld [vmem:[#allocation2 + $0x20] sm:$0xff]
    %v336 = vld [vmem:[#allocation2 + $0x28] sm:$0xff]
    %v337 = vld [vmem:[#allocation2 + $0x30] sm:$0xff]
    %v338 = vld [vmem:[#allocation2 + $0x38] sm:$0xff]
    %v339 = vld [vmem:[#allocation2 + $0x40] sm:$0xff]
    %v340 = vld [vmem:[#allocation2 + $0x48] sm:$0xff]
    %v341 = vld [vmem:[#allocation2 + $0x50] sm:$0xff]
    %v342 = vld [vmem:[#allocation2 + $0x58] sm:$0xff]
    %v343 = vld [vmem:[#allocation2 + $0x60] sm:$0xff]
    %v344 = vld [vmem:[#allocation2 + $0x68] sm:$0xff]
    %v345 = vld [vmem:[#allocation2 + $0x70] sm:$0xff]
    %v346 = vld [vmem:[#allocation2 + $0x78] sm:$0xff]
    %v347 = vld [vmem:[%s2] sm:$0xff]
    %v348 = vld [vmem:[%s2 + $0x8] sm:$0xff]
    %v349 = vld [vmem:[%s2 + $0x10] sm:$0xff]
    %v350 = vld [vmem:[%s2 + $0x18] sm:$0xff]
    %v351 = vld [vmem:[%s2 + $0x20] sm:$0xff]
    %v352 = vld [vmem:[%s2 + $0x28] sm:$0xff]
    %v353 = vld [vmem:[%s2 + $0x30] sm:$0xff]
    %v354 = vld [vmem:[%s2 + $0x38] sm:$0xff]
    %v355 = vld [vmem:[%s2 + $0x40] sm:$0xff]
    %v356 = vld [vmem:[%s2 + $0x48] sm:$0xff]
    %v357 = vld [vmem:[%s2 + $0x50] sm:$0xff]
    %v358 = vld [vmem:[%s2 + $0x58] sm:$0xff]
    %v359 = vld [vmem:[%s2 + $0x60] sm:$0xff]
    %v360 = vld [vmem:[%s2 + $0x68] sm:$0xff]
    %v361 = vld [vmem:[%s2 + $0x70] sm:$0xff]
    %v362 = vld [vmem:[%s2 + $0x78] sm:$0xff]
    %364 = vset.pattern.permute.xlu0 0
    %365 = vperm.xlu0 %364, %v347
    %v366 = vpop.permute.xlu0 %365
    %369 = vset.pattern.permute.xlu0 0
    %370 = vperm.xlu0 %369, %v348
    %v371 = vpop.permute.xlu0 %370
    %374 = vset.pattern.permute.xlu0 0
    %375 = vperm.xlu0 %374, %v349
    %v376 = vpop.permute.xlu0 %375
    %379 = vset.pattern.permute.xlu0 0
    %380 = vperm.xlu0 %379, %v350
    %v381 = vpop.permute.xlu0 %380
    %384 = vset.pattern.permute.xlu0 0
    %385 = vperm.xlu0 %384, %v351
    %v386 = vpop.permute.xlu0 %385
    %389 = vset.pattern.permute.xlu0 0
    %390 = vperm.xlu0 %389, %v352
    %v391 = vpop.permute.xlu0 %390
    %394 = vset.pattern.permute.xlu0 0
    %395 = vperm.xlu0 %394, %v353
    %v396 = vpop.permute.xlu0 %395
    %399 = vset.pattern.permute.xlu0 0
    %400 = vperm.xlu0 %399, %v354
    %v401 = vpop.permute.xlu0 %400
    %404 = vset.pattern.permute.xlu0 0
    %405 = vperm.xlu0 %404, %v355
    %v406 = vpop.permute.xlu0 %405
    %409 = vset.pattern.permute.xlu0 0
    %410 = vperm.xlu0 %409, %v356
    %v411 = vpop.permute.xlu0 %410
    %414 = vset.pattern.permute.xlu0 0
    %415 = vperm.xlu0 %414, %v357
    %v416 = vpop.permute.xlu0 %415
    %419 = vset.pattern.permute.xlu0 0
    %420 = vperm.xlu0 %419, %v358
    %v421 = vpop.permute.xlu0 %420
    %424 = vset.pattern.permute.xlu0 0
    %425 = vperm.xlu0 %424, %v359
    %v426 = vpop.permute.xlu0 %425
    %429 = vset.pattern.permute.xlu0 0
    %430 = vperm.xlu0 %429, %v360
    %v431 = vpop.permute.xlu0 %430
    %434 = vset.pattern.permute.xlu0 0
    %435 = vperm.xlu0 %434, %v361
    %v436 = vpop.permute.xlu0 %435
    %439 = vset.pattern.permute.xlu0 0
    %440 = vperm.xlu0 %439, %v362
    %v441 = vpop.permute.xlu0 %440
    %v443 = vmul.f32 %v331, %v366
    %v444 = vmul.f32 %v332, %v371
    %v445 = vmul.f32 %v333, %v376
    %v446 = vmul.f32 %v334, %v381
    %v447 = vmul.f32 %v335, %v386
    %v448 = vmul.f32 %v336, %v391
    %v449 = vmul.f32 %v337, %v396
    %v450 = vmul.f32 %v338, %v401
    %v451 = vmul.f32 %v339, %v406
    %v452 = vmul.f32 %v340, %v411
    %v453 = vmul.f32 %v341, %v416
    %v454 = vmul.f32 %v342, %v421
    %v455 = vmul.f32 %v343, %v426
    %v456 = vmul.f32 %v344, %v431
    %v457 = vmul.f32 %v345, %v436
    %v458 = vmul.f32 %v346, %v441
    %v459 = vld [vmem:[%s3] sm:$0x1]
    %v461 = vlaneseq
    %v462 = vshrl.u32 %v461, 7
    %v463 = vsub.s32 0, %v462
    %v464 = vrot.slane %v459, %v463
    %v466 = vadd.f32 %v443, %v464
    %v467 = vadd.f32 %v444, %v464
    %v468 = vadd.f32 %v445, %v464
    %v469 = vadd.f32 %v446, %v464
    %v470 = vadd.f32 %v447, %v464
    %v471 = vadd.f32 %v448, %v464
    %v472 = vadd.f32 %v449, %v464
    %v473 = vadd.f32 %v450, %v464
    %v474 = vadd.f32 %v451, %v464
    %v475 = vadd.f32 %v452, %v464
    %v476 = vadd.f32 %v453, %v464
    %v477 = vadd.f32 %v454, %v464
    %v478 = vadd.f32 %v455, %v464
    %v479 = vadd.f32 %v456, %v464
    %v480 = vadd.f32 %v457, %v464
    %v481 = vadd.f32 %v458, %v464
    %v482 = vmax.f32 %v466, 0.0
    %v483 = vmax.f32 %v467, 0.0
    %v484 = vmax.f32 %v468, 0.0
    %v485 = vmax.f32 %v469, 0.0
    %v486 = vmax.f32 %v470, 0.0
    %v487 = vmax.f32 %v471, 0.0
    %v488 = vmax.f32 %v472, 0.0
    %v489 = vmax.f32 %v473, 0.0
    %v490 = vmax.f32 %v474, 0.0
    %v491 = vmax.f32 %v475, 0.0
    %v492 = vmax.f32 %v476, 0.0
    %v493 = vmax.f32 %v477, 0.0
    %v494 = vmax.f32 %v478, 0.0
    %v495 = vmax.f32 %v479, 0.0
    %v496 = vmax.f32 %v480, 0.0
    %v497 = vmax.f32 %v481, 0.0
    %v498 = vpack.c.bf16 %v483, %v482
    %v499 = vpack.c.bf16 %v485, %v484
    %v500 = vpack.c.bf16 %v487, %v486
    %v501 = vpack.c.bf16 %v489, %v488
    %v502 = vpack.c.bf16 %v491, %v490
    %v503 = vpack.c.bf16 %v493, %v492
    %v504 = vpack.c.bf16 %v495, %v494
    %v505 = vpack.c.bf16 %v497, %v496
    %v506 = vld [vmem:[%s4] sm:$0xf]
    %v507 = vld [vmem:[%s4 + $0x4] sm:$0xf]
    %v508 = vld [vmem:[%s4 + $0x8] sm:$0xf]
    %v509 = vld [vmem:[%s4 + $0xc] sm:$0xf]
    %v510 = vld [vmem:[%s4 + $0x10] sm:$0xf]
    %v511 = vld [vmem:[%s4 + $0x14] sm:$0xf]
    %v512 = vld [vmem:[%s4 + $0x18] sm:$0xf]
    %v513 = vld [vmem:[%s4 + $0x1c] sm:$0xf]
    %v514 = vld [vmem:[%s4 + $0x20] sm:$0xf]
    %v515 = vld [vmem:[%s4 + $0x24] sm:$0xf]
    %v516 = vld [vmem:[%s4 + $0x28] sm:$0xf]
    %v517 = vld [vmem:[%s4 + $0x2c] sm:$0xf]
    %v518 = vld [vmem:[%s4 + $0x30] sm:$0xf]
    %v519 = vld [vmem:[%s4 + $0x34] sm:$0xf]
    %v520 = vld [vmem:[%s4 + $0x38] sm:$0xf]
    %v521 = vld [vmem:[%s4 + $0x3c] sm:$0xf]
    %v522 = vld [vmem:[%s5] sm:$0x1]
    %v524 = vlaneseq
    %v525 = vshrl.u32 %v524, 7
    %v526 = vsub.s32 0, %v525
    %v527 = vrot.slane %v522, %v526
    %v545 = vunpack.c.l.b16 %v506
    %v546 = vunpack.c.l.b16 %v507
    %v547 = vunpack.c.l.b16 %v508
    %v548 = vunpack.c.l.b16 %v509
    %v549 = vunpack.c.l.b16 %v510
    %v550 = vunpack.c.l.b16 %v511
    %v551 = vunpack.c.l.b16 %v512
    %v552 = vunpack.c.l.b16 %v513
    %v553 = vunpack.c.l.b16 %v514
    %v554 = vunpack.c.l.b16 %v515
    %v555 = vunpack.c.l.b16 %v516
    %v556 = vunpack.c.l.b16 %v517
    %v557 = vunpack.c.l.b16 %v518
    %v558 = vunpack.c.l.b16 %v519
    %v559 = vunpack.c.l.b16 %v520
    %v560 = vunpack.c.l.b16 %v521
    %v561 = vpack.c.b16 %v546, %v545
    %v562 = vpack.c.b16 %v548, %v547
    %v563 = vpack.c.b16 %v550, %v549
    %v564 = vpack.c.b16 %v552, %v551
    %v565 = vpack.c.b16 %v554, %v553
    %v566 = vpack.c.b16 %v556, %v555
    %v567 = vpack.c.b16 %v558, %v557
    %v568 = vpack.c.b16 %v560, %v559
    %577 = vmatprep.subr.bf16.mxu0 0
    %578 = vmatpush1.bf16.msra.mxu0 %v568
    %579 = vmatprep.subr.bf16.mxu0 0
    %580 = vmatpush1.bf16.msra.mxu0 %v567
    %581 = vmatprep.subr.bf16.mxu0 0
    %582 = vmatpush1.bf16.msra.mxu0 %v566
    %583 = vmatprep.subr.bf16.mxu0 0
    %584 = vmatpush1.bf16.msra.mxu0 %v565
    %585 = vmatprep.subr.bf16.mxu0 0
    %586 = vmatpush1.bf16.msra.mxu0 %v564
    %587 = vmatprep.subr.bf16.mxu0 0
    %588 = vmatpush1.bf16.msra.mxu0 %v563
    %589 = vmatprep.subr.bf16.mxu0 0
    %590 = vmatpush1.bf16.msra.mxu0 %v562
    %591 = vmatprep.subr.bf16.mxu0 0
    %592 = vmatpush1.bf16.msra.mxu0 %v561
    %593 = vmatprep.subr.bf16.mxu0 0
    %594 = vmatpush2.bf16.msra.mxu0 0
    %595 = vmatprep.subr.bf16.mxu0 0
    %596 = vmatpush2.bf16.msra.mxu0 0
    %597 = vmatprep.subr.bf16.mxu0 0
    %598 = vmatpush2.bf16.msra.mxu0 0
    %599 = vmatprep.subr.bf16.mxu0 0
    %600 = vmatpush2.bf16.msra.mxu0 0
    %601 = vmatprep.subr.bf16.mxu0 0
    %602 = vmatpush2.bf16.msra.mxu0 0
    %603 = vmatprep.subr.bf16.mxu0 0
    %604 = vmatpush2.bf16.msra.mxu0 0
    %605 = vmatprep.subr.bf16.mxu0 0
    %606 = vmatpush2.bf16.msra.mxu0 0
    %607 = vmatprep.subr.bf16.mxu0 0
    %608 = vmatpush2.bf16.msra.mxu0 0
    %609 = vmatprep.mubr.bf16.mxu0 0
    %610 = vmatmul.mubr.bf16.gmra.mxu0 %v498
    %v611 = vpop.f32.mrf.mxu0
    %v612 = vadd.f32 %v527, %v611
    %v613 = vpop.f32.mrf.mxu0
    %v614 = vpop.f32.mrf.mxu0
    %v615 = vadd.f32 %v527, %v614
    %v616 = vpop.f32.mrf.mxu0
    %617 = vmatprep.mubr.bf16.mxu0 0
    %618 = vmatmul.mubr.bf16.gmra.mxu0 %v499
    %v619 = vpop.f32.mrf.mxu0
    %v620 = vadd.f32 %v527, %v619
    %v621 = vpop.f32.mrf.mxu0
    %v622 = vpop.f32.mrf.mxu0
    %v623 = vadd.f32 %v527, %v622
    %v624 = vpop.f32.mrf.mxu0
    %625 = vmatprep.mubr.bf16.mxu0 0
    %626 = vmatmul.mubr.bf16.gmra.mxu0 %v500
    %v627 = vpop.f32.mrf.mxu0
    %v628 = vadd.f32 %v527, %v627
    %v629 = vpop.f32.mrf.mxu0
    %v630 = vpop.f32.mrf.mxu0
    %v631 = vadd.f32 %v527, %v630
    %v632 = vpop.f32.mrf.mxu0
    %633 = vmatprep.mubr.bf16.mxu0 0
    %634 = vmatmul.mubr.bf16.gmra.mxu0 %v501
    %v635 = vpop.f32.mrf.mxu0
    %v636 = vadd.f32 %v527, %v635
    %v637 = vpop.f32.mrf.mxu0
    %v638 = vpop.f32.mrf.mxu0
    %v639 = vadd.f32 %v527, %v638
    %v640 = vpop.f32.mrf.mxu0
    %641 = vmatprep.mubr.bf16.mxu0 0
    %642 = vmatmul.mubr.bf16.gmra.mxu0 %v502
    %v643 = vpop.f32.mrf.mxu0
    %v644 = vadd.f32 %v527, %v643
    %v645 = vpop.f32.mrf.mxu0
    %v646 = vpop.f32.mrf.mxu0
    %v647 = vadd.f32 %v527, %v646
    %v648 = vpop.f32.mrf.mxu0
    %649 = vmatprep.mubr.bf16.mxu0 0
    %650 = vmatmul.mubr.bf16.gmra.mxu0 %v503
    %v651 = vpop.f32.mrf.mxu0
    %v652 = vadd.f32 %v527, %v651
    %v653 = vpop.f32.mrf.mxu0
    %v654 = vpop.f32.mrf.mxu0
    %v655 = vadd.f32 %v527, %v654
    %v656 = vpop.f32.mrf.mxu0
    %657 = vmatprep.mubr.bf16.mxu0 0
    %658 = vmatmul.mubr.bf16.gmra.mxu0 %v504
    %v659 = vpop.f32.mrf.mxu0
    %v660 = vadd.f32 %v527, %v659
    %v661 = vpop.f32.mrf.mxu0
    %v662 = vpop.f32.mrf.mxu0
    %v663 = vadd.f32 %v527, %v662
    %v664 = vpop.f32.mrf.mxu0
    %665 = vmatprep.mubr.bf16.mxu0 0
    %666 = vmatmul.mubr.bf16.gmra.mxu0 %v505
    %v667 = vpop.f32.mrf.mxu0
    %v668 = vadd.f32 %v527, %v667
    %v669 = vpop.f32.mrf.mxu0
    %v670 = vpop.f32.mrf.mxu0
    %v671 = vadd.f32 %v527, %v670
    %v672 = vpop.f32.mrf.mxu0
    %673 = vdwg.mxu0
    %v674 = vmax.f32 %v612, 0.0
    %v675 = vmax.f32 %v615, 0.0
    %v676 = vmax.f32 %v620, 0.0
    %v677 = vmax.f32 %v623, 0.0
    %v678 = vmax.f32 %v628, 0.0
    %v679 = vmax.f32 %v631, 0.0
    %v680 = vmax.f32 %v636, 0.0
    %v681 = vmax.f32 %v639, 0.0
    %v682 = vmax.f32 %v644, 0.0
    %v683 = vmax.f32 %v647, 0.0
    %v684 = vmax.f32 %v652, 0.0
    %v685 = vmax.f32 %v655, 0.0
    %v686 = vmax.f32 %v660, 0.0
    %v687 = vmax.f32 %v663, 0.0
    %v688 = vmax.f32 %v668, 0.0
    %v689 = vmax.f32 %v671, 0.0
    %v690 = vpack.c.bf16 %v675, %v674
    %v691 = vpack.c.bf16 %v677, %v676
    %v692 = vpack.c.bf16 %v679, %v678
    %v693 = vpack.c.bf16 %v681, %v680
    %v694 = vpack.c.bf16 %v683, %v682
    %v695 = vpack.c.bf16 %v685, %v684
    %v696 = vpack.c.bf16 %v687, %v686
    %v697 = vpack.c.bf16 %v689, %v688
    %v698 = vld [vmem:[%s6] sm:$0xf]
    %v699 = vld [vmem:[%s6 + $0x4] sm:$0xf]
    %v700 = vld [vmem:[%s6 + $0x8] sm:$0xf]
    %v701 = vld [vmem:[%s6 + $0xc] sm:$0xf]
    %v702 = vld [vmem:[%s6 + $0x10] sm:$0xf]
    %v703 = vld [vmem:[%s6 + $0x14] sm:$0xf]
    %v704 = vld [vmem:[%s6 + $0x18] sm:$0xf]
    %v705 = vld [vmem:[%s6 + $0x1c] sm:$0xf]
    %v706 = vld [vmem:[%s6 + $0x20] sm:$0xf]
    %v707 = vld [vmem:[%s6 + $0x24] sm:$0xf]
    %v708 = vld [vmem:[%s6 + $0x28] sm:$0xf]
    %v709 = vld [vmem:[%s6 + $0x2c] sm:$0xf]
    %v710 = vld [vmem:[%s6 + $0x30] sm:$0xf]
    %v711 = vld [vmem:[%s6 + $0x34] sm:$0xf]
    %v712 = vld [vmem:[%s6 + $0x38] sm:$0xf]
    %v713 = vld [vmem:[%s6 + $0x3c] sm:$0xf]
    %v714 = vld [vmem:[%s7] sm:$0x1]
    %v716 = vlaneseq
    %v717 = vshrl.u32 %v716, 7
    %v718 = vsub.s32 0, %v717
    %v719 = vrot.slane %v714, %v718
    %v737 = vunpack.c.l.b16 %v698
    %v738 = vunpack.c.l.b16 %v699
    %v739 = vunpack.c.l.b16 %v700
    %v740 = vunpack.c.l.b16 %v701
    %v741 = vunpack.c.l.b16 %v702
    %v742 = vunpack.c.l.b16 %v703
    %v743 = vunpack.c.l.b16 %v704
    %v744 = vunpack.c.l.b16 %v705
    %v745 = vunpack.c.l.b16 %v706
    %v746 = vunpack.c.l.b16 %v707
    %v747 = vunpack.c.l.b16 %v708
    %v748 = vunpack.c.l.b16 %v709
    %v749 = vunpack.c.l.b16 %v710
    %v750 = vunpack.c.l.b16 %v711
    %v751 = vunpack.c.l.b16 %v712
    %v752 = vunpack.c.l.b16 %v713
    %v753 = vpack.c.b16 %v738, %v737
    %v754 = vpack.c.b16 %v740, %v739
    %v755 = vpack.c.b16 %v742, %v741
    %v756 = vpack.c.b16 %v744, %v743
    %v757 = vpack.c.b16 %v746, %v745
    %v758 = vpack.c.b16 %v748, %v747
    %v759 = vpack.c.b16 %v750, %v749
    %v760 = vpack.c.b16 %v752, %v751
    %769 = vmatprep.subr.bf16.mxu0 0
    %770 = vmatpush1.bf16.msra.mxu0 %v760
    %771 = vmatprep.subr.bf16.mxu0 0
    %772 = vmatpush1.bf16.msra.mxu0 %v759
    %773 = vmatprep.subr.bf16.mxu0 0
    %774 = vmatpush1.bf16.msra.mxu0 %v758
    %775 = vmatprep.subr.bf16.mxu0 0
    %776 = vmatpush1.bf16.msra.mxu0 %v757
    %777 = vmatprep.subr.bf16.mxu0 0
    %778 = vmatpush1.bf16.msra.mxu0 %v756
    %779 = vmatprep.subr.bf16.mxu0 0
    %780 = vmatpush1.bf16.msra.mxu0 %v755
    %781 = vmatprep.subr.bf16.mxu0 0
    %782 = vmatpush1.bf16.msra.mxu0 %v754
    %783 = vmatprep.subr.bf16.mxu0 0
    %784 = vmatpush1.bf16.msra.mxu0 %v753
    %785 = vmatprep.subr.bf16.mxu0 0
    %786 = vmatpush2.bf16.msra.mxu0 0
    %787 = vmatprep.subr.bf16.mxu0 0
    %788 = vmatpush2.bf16.msra.mxu0 0
    %789 = vmatprep.subr.bf16.mxu0 0
    %790 = vmatpush2.bf16.msra.mxu0 0
    %791 = vmatprep.subr.bf16.mxu0 0
    %792 = vmatpush2.bf16.msra.mxu0 0
    %793 = vmatprep.subr.bf16.mxu0 0
    %794 = vmatpush2.bf16.msra.mxu0 0
    %795 = vmatprep.subr.bf16.mxu0 0
    %796 = vmatpush2.bf16.msra.mxu0 0
    %797 = vmatprep.subr.bf16.mxu0 0
    %798 = vmatpush2.bf16.msra.mxu0 0
    %799 = vmatprep.subr.bf16.mxu0 0
    %800 = vmatpush2.bf16.msra.mxu0 0
    %801 = vmatprep.mubr.bf16.mxu0 0
    %802 = vmatmul.mubr.bf16.gmra.mxu0 %v690
    %v803 = vpop.f32.mrf.mxu0
    %v804 = vadd.f32 %v719, %v803
    %v805 = vpop.f32.mrf.mxu0
    %v806 = vpop.f32.mrf.mxu0
    %v807 = vadd.f32 %v719, %v806
    %v808 = vpop.f32.mrf.mxu0
    %809 = vmatprep.mubr.bf16.mxu0 0
    %810 = vmatmul.mubr.bf16.gmra.mxu0 %v691
    %v811 = vpop.f32.mrf.mxu0
    %v812 = vadd.f32 %v719, %v811
    %v813 = vpop.f32.mrf.mxu0
    %v814 = vpop.f32.mrf.mxu0
    %v815 = vadd.f32 %v719, %v814
    %v816 = vpop.f32.mrf.mxu0
    %817 = vmatprep.mubr.bf16.mxu0 0
    %818 = vmatmul.mubr.bf16.gmra.mxu0 %v692
    %v819 = vpop.f32.mrf.mxu0
    %v820 = vadd.f32 %v719, %v819
    %v821 = vpop.f32.mrf.mxu0
    %v822 = vpop.f32.mrf.mxu0
    %v823 = vadd.f32 %v719, %v822
    %v824 = vpop.f32.mrf.mxu0
    %825 = vmatprep.mubr.bf16.mxu0 0
    %826 = vmatmul.mubr.bf16.gmra.mxu0 %v693
    %v827 = vpop.f32.mrf.mxu0
    %v828 = vadd.f32 %v719, %v827
    %v829 = vpop.f32.mrf.mxu0
    %v830 = vpop.f32.mrf.mxu0
    %v831 = vadd.f32 %v719, %v830
    %v832 = vpop.f32.mrf.mxu0
    %833 = vmatprep.mubr.bf16.mxu0 0
    %834 = vmatmul.mubr.bf16.gmra.mxu0 %v694
    %v835 = vpop.f32.mrf.mxu0
    %v836 = vadd.f32 %v719, %v835
    %v837 = vpop.f32.mrf.mxu0
    %v838 = vpop.f32.mrf.mxu0
    %v839 = vadd.f32 %v719, %v838
    %v840 = vpop.f32.mrf.mxu0
    %841 = vmatprep.mubr.bf16.mxu0 0
    %842 = vmatmul.mubr.bf16.gmra.mxu0 %v695
    %v843 = vpop.f32.mrf.mxu0
    %v844 = vadd.f32 %v719, %v843
    %v845 = vpop.f32.mrf.mxu0
    %v846 = vpop.f32.mrf.mxu0
    %v847 = vadd.f32 %v719, %v846
    %v848 = vpop.f32.mrf.mxu0
    %849 = vmatprep.mubr.bf16.mxu0 0
    %850 = vmatmul.mubr.bf16.gmra.mxu0 %v696
    %v851 = vpop.f32.mrf.mxu0
    %v852 = vadd.f32 %v719, %v851
    %v853 = vpop.f32.mrf.mxu0
    %v854 = vpop.f32.mrf.mxu0
    %v855 = vadd.f32 %v719, %v854
    %v856 = vpop.f32.mrf.mxu0
    %857 = vmatprep.mubr.bf16.mxu0 0
    %858 = vmatmul.mubr.bf16.gmra.mxu0 %v697
    %v859 = vpop.f32.mrf.mxu0
    %v860 = vadd.f32 %v719, %v859
    %v861 = vpop.f32.mrf.mxu0
    %v862 = vpop.f32.mrf.mxu0
    %v863 = vadd.f32 %v719, %v862
    %v864 = vpop.f32.mrf.mxu0
    %865 = vdwg.mxu0
    %866 = vmax.xlane.f32.xlu0 %v804
    %v867 = vpop.xlane.xlu0 %866
    %868 = vmax.xlane.f32.xlu0 %v807
    %v869 = vpop.xlane.xlu0 %868
    %870 = vmax.xlane.f32.xlu0 %v812
    %v871 = vpop.xlane.xlu0 %870
    %872 = vmax.xlane.f32.xlu0 %v815
    %v873 = vpop.xlane.xlu0 %872
    %874 = vmax.xlane.f32.xlu0 %v820
    %v875 = vpop.xlane.xlu0 %874
    %876 = vmax.xlane.f32.xlu0 %v823
    %v877 = vpop.xlane.xlu0 %876
    %878 = vmax.xlane.f32.xlu0 %v828
    %v879 = vpop.xlane.xlu0 %878
    %880 = vmax.xlane.f32.xlu0 %v831
    %v881 = vpop.xlane.xlu0 %880
    %882 = vmax.xlane.f32.xlu0 %v836
    %v883 = vpop.xlane.xlu0 %882
    %884 = vmax.xlane.f32.xlu0 %v839
    %v885 = vpop.xlane.xlu0 %884
    %886 = vmax.xlane.f32.xlu0 %v844
    %v887 = vpop.xlane.xlu0 %886
    %888 = vmax.xlane.f32.xlu0 %v847
    %v889 = vpop.xlane.xlu0 %888
    %890 = vmax.xlane.f32.xlu0 %v852
    %v891 = vpop.xlane.xlu0 %890
    %892 = vmax.xlane.f32.xlu0 %v855
    %v893 = vpop.xlane.xlu0 %892
    %894 = vmax.xlane.f32.xlu0 %v860
    %v895 = vpop.xlane.xlu0 %894
    %896 = vmax.xlane.f32.xlu0 %v863
    %v897 = vpop.xlane.xlu0 %896
    %v898 = vsub.f32 %v804, %v867
    %v899 = vsub.f32 %v807, %v869
    %v900 = vsub.f32 %v812, %v871
    %v901 = vsub.f32 %v815, %v873
    %v902 = vsub.f32 %v820, %v875
    %v903 = vsub.f32 %v823, %v877
    %v904 = vsub.f32 %v828, %v879
    %v905 = vsub.f32 %v831, %v881
    %v906 = vsub.f32 %v836, %v883
    %v907 = vsub.f32 %v839, %v885
    %v908 = vsub.f32 %v844, %v887
    %v909 = vsub.f32 %v847, %v889
    %v910 = vsub.f32 %v852, %v891
    %v911 = vsub.f32 %v855, %v893
    %v912 = vsub.f32 %v860, %v895
    %v913 = vsub.f32 %v863, %v897
    %v914 = vmul.f32 %v898, 1.442695
    %v915 = vpow.pop %v914
    %v916 = vmul.f32 %v899, 1.442695
    %v917 = vpow.pop %v916
    %v918 = vmul.f32 %v900, 1.442695
    %v919 = vpow.pop %v918
    %v920 = vmul.f32 %v901, 1.442695
    %v921 = vpow.pop %v920
    %v922 = vmul.f32 %v902, 1.442695
    %v923 = vpow.pop %v922
    %v924 = vmul.f32 %v903, 1.442695
    %v925 = vpow.pop %v924
    %v926 = vmul.f32 %v904, 1.442695
    %v927 = vpow.pop %v926
    %v928 = vmul.f32 %v905, 1.442695
    %v929 = vpow.pop %v928
    %v930 = vmul.f32 %v906, 1.442695
    %v931 = vpow.pop %v930
    %v932 = vmul.f32 %v907, 1.442695
    %v933 = vpow.pop %v932
    %v934 = vmul.f32 %v908, 1.442695
    %v935 = vpow.pop %v934
    %v936 = vmul.f32 %v909, 1.442695
    %v937 = vpow.pop %v936
    %v938 = vmul.f32 %v910, 1.442695
    %v939 = vpow.pop %v938
    %v940 = vmul.f32 %v911, 1.442695
    %v941 = vpow.pop %v940
    %v942 = vmul.f32 %v912, 1.442695
    %v943 = vpow.pop %v942
    %v944 = vmul.f32 %v913, 1.442695
    %v945 = vpow.pop %v944
    %946 = vadd.xlane.f32.xlu0 %v915
    %v947 = vpop.xlane.xlu0 %946
    %948 = vadd.xlane.f32.xlu0 %v917
    %v949 = vpop.xlane.xlu0 %948
    %950 = vadd.xlane.f32.xlu0 %v919
    %v951 = vpop.xlane.xlu0 %950
    %952 = vadd.xlane.f32.xlu0 %v921
    %v953 = vpop.xlane.xlu0 %952
    %954 = vadd.xlane.f32.xlu0 %v923
    %v955 = vpop.xlane.xlu0 %954
    %956 = vadd.xlane.f32.xlu0 %v925
    %v957 = vpop.xlane.xlu0 %956
    %958 = vadd.xlane.f32.xlu0 %v927
    %v959 = vpop.xlane.xlu0 %958
    %960 = vadd.xlane.f32.xlu0 %v929
    %v961 = vpop.xlane.xlu0 %960
    %962 = vadd.xlane.f32.xlu0 %v931
    %v963 = vpop.xlane.xlu0 %962
    %964 = vadd.xlane.f32.xlu0 %v933
    %v965 = vpop.xlane.xlu0 %964
    %966 = vadd.xlane.f32.xlu0 %v935
    %v967 = vpop.xlane.xlu0 %966
    %968 = vadd.xlane.f32.xlu0 %v937
    %v969 = vpop.xlane.xlu0 %968
    %970 = vadd.xlane.f32.xlu0 %v939
    %v971 = vpop.xlane.xlu0 %970
    %972 = vadd.xlane.f32.xlu0 %v941
    %v973 = vpop.xlane.xlu0 %972
    %974 = vadd.xlane.f32.xlu0 %v943
    %v975 = vpop.xlane.xlu0 %974
    %976 = vadd.xlane.f32.xlu0 %v945
    %v977 = vpop.xlane.xlu0 %976
    %v978 = vlog2.pop %v947
    %v979 = vmul.f32 %v978, 0.6931472
    %v980 = vlog2.pop %v949
    %v981 = vmul.f32 %v980, 0.6931472
    %v982 = vlog2.pop %v951
    %v983 = vmul.f32 %v982, 0.6931472
    %v984 = vlog2.pop %v953
    %v985 = vmul.f32 %v984, 0.6931472
    %v986 = vlog2.pop %v955
    %v987 = vmul.f32 %v986, 0.6931472
    %v988 = vlog2.pop %v957
    %v989 = vmul.f32 %v988, 0.6931472
    %v990 = vlog2.pop %v959
    %v991 = vmul.f32 %v990, 0.6931472
    %v992 = vlog2.pop %v961
    %v993 = vmul.f32 %v992, 0.6931472
    %v994 = vlog2.pop %v963
    %v995 = vmul.f32 %v994, 0.6931472
    %v996 = vlog2.pop %v965
    %v997 = vmul.f32 %v996, 0.6931472
    %v998 = vlog2.pop %v967
    %v999 = vmul.f32 %v998, 0.6931472
    %v1000 = vlog2.pop %v969
    %v1001 = vmul.f32 %v1000, 0.6931472
    %v1002 = vlog2.pop %v971
    %v1003 = vmul.f32 %v1002, 0.6931472
    %v1004 = vlog2.pop %v973
    %v1005 = vmul.f32 %v1004, 0.6931472
    %v1006 = vlog2.pop %v975
    %v1007 = vmul.f32 %v1006, 0.6931472
    %v1008 = vlog2.pop %v977
    %v1009 = vmul.f32 %v1008, 0.6931472
    %v1010 = vsub.f32 %v898, %v979
    %v1011 = vsub.f32 %v899, %v981
    %v1012 = vsub.f32 %v900, %v983
    %v1013 = vsub.f32 %v901, %v985
    %v1014 = vsub.f32 %v902, %v987
    %v1015 = vsub.f32 %v903, %v989
    %v1016 = vsub.f32 %v904, %v991
    %v1017 = vsub.f32 %v905, %v993
    %v1018 = vsub.f32 %v906, %v995
    %v1019 = vsub.f32 %v907, %v997
    %v1020 = vsub.f32 %v908, %v999
    %v1021 = vsub.f32 %v909, %v1001
    %v1022 = vsub.f32 %v910, %v1003
    %v1023 = vsub.f32 %v911, %v1005
    %v1024 = vsub.f32 %v912, %v1007
    %v1025 = vsub.f32 %v913, %v1009
    %1026 = vst [vmem:[%s8] sm:$0xff] %v1010
    %1027 = vst [vmem:[%s8 + $0x8] sm:$0xff] %v1011
    %1028 = vst [vmem:[%s8 + $0x10] sm:$0xff] %v1012
    %1029 = vst [vmem:[%s8 + $0x18] sm:$0xff] %v1013
    %1030 = vst [vmem:[%s8 + $0x20] sm:$0xff] %v1014
    %1031 = vst [vmem:[%s8 + $0x28] sm:$0xff] %v1015
    %1032 = vst [vmem:[%s8 + $0x30] sm:$0xff] %v1016
    %1033 = vst [vmem:[%s8 + $0x38] sm:$0xff] %v1017
    %1034 = vst [vmem:[%s8 + $0x40] sm:$0xff] %v1018
    %1035 = vst [vmem:[%s8 + $0x48] sm:$0xff] %v1019
    %1036 = vst [vmem:[%s8 + $0x50] sm:$0xff] %v1020
    %1037 = vst [vmem:[%s8 + $0x58] sm:$0xff] %v1021
    %1038 = vst [vmem:[%s8 + $0x60] sm:$0xff] %v1022
    %1039 = vst [vmem:[%s8 + $0x68] sm:$0xff] %v1023
    %1040 = vst [vmem:[%s8 + $0x70] sm:$0xff] %v1024
    %1041 = vst [vmem:[%s8 + $0x78] sm:$0xff] %v1025
  $region41: #{gnn_mlp_forward.3} parent=0 // pred_fallthru
    _
  // Predicated region
  $region42: #{gnn_mlp_forward.3} parent=0 // pred_check
    _
  $region43: #{gnn_mlp_forward.3} parent=0 // pred_check_branch
    %1043 = sbr.rel (0) target = $region45
  $region44: #{gnn_mlp_forward.3} parent=0 // pred_region
    _
  $region45: #{gnn_mlp_forward.3} parent=0 // pred_fallthru
    _
  // Predicated region
  $region46: #{gnn_mlp_forward.3} parent=0 // pred_check
    _
  $region47: #{gnn_mlp_forward.3} parent=0 // pred_check_branch
    %1045 = sbr.rel (0) target = $region49
  $region48: #{gnn_mlp_forward.3} parent=0 // pred_region
    _
  $region49: #{gnn_mlp_forward.3} parent=0 // pred_fallthru
    _

</llo_original>
